<compile_context>
chip_gen: v6e
topology: v6e:2x2x1
jax: 0.10.0
libtpu: 0.0.40
codegen_flags: <defaults>
</compile_context>

<pallas_src>
import math
import functools

import jax
import jax.numpy as jnp
from jax.experimental import pallas as pl
from jax.experimental.pallas import tpu as pltpu

_COMPUTE_DTYPE = jnp.bfloat16   # MXU-native operand dtype (f32 accumulation)


# ----------------------------------------------------------------------------
# Fused decoder-layer kernel (one block of batch elements per grid step)
# ----------------------------------------------------------------------------

def _decoder_layer_kernel(
    xs_ref, enc_ref,
    # masked self-attention (1/sqrt(d_k) already folded into wq)
    wq1_ref, wk1_ref, wv1_ref, fcw1_ref, fcb1_ref, g1_ref, b1_ref,
    # cross attention
    wq2_ref, wk2_ref, wv2_ref, fcw2_ref, fcb2_ref, g2_ref, b2_ref,
    # feed-forward + final AddNorm
    w1_ref, bb1_ref, w2_ref, bb2_ref, g3_ref, b3_ref,
    o_ref,
    *, nhead, d_k, eps):
  cdt = _COMPUTE_DTYPE
  f32 = jnp.float32
  bb, sd, d = xs_ref.shape
  se = enc_ref.shape[1]

  # Flatten the batch block into the matmul M dimension (lane dim untouched,
  # so this reshape is cheap).  All dense projections / FFN matmuls then see
  # M = bb*seq rows instead of seq rows.
  xs = xs_ref[...].reshape(bb * sd, d)     # (bb*Sd, D) f32
  enc = enc_ref[...].reshape(bb * se, d)   # (bb*Se, D) f32

  def mha(x_q, x_kv, sq, skv, wq_ref, wk_ref, wv_ref, fcw_ref, fcb_ref, causal):
    # Full-D projections: single (M, D) @ (D, D) MXU matmuls, bf16 in, f32 out.
    q = jnp.dot(x_q.astype(cdt), wq_ref[...], preferred_element_type=f32)
    k = jnp.dot(x_kv.astype(cdt), wk_ref[...], preferred_element_type=f32)
    v = jnp.dot(x_kv.astype(cdt), wv_ref[...], preferred_element_type=f32)
    q16, k16, v16 = q.astype(cdt), k.astype(cdt), v.astype(cdt)

    bias = None
    if causal:
      # Additive causal bias, built once per MHA (not per head).  A large
      # finite negative avoids -inf arithmetic hazards.
      row = jax.lax.broadcasted_iota(jnp.int32, (sq, skv), 0)
      col = jax.lax.broadcasted_iota(jnp.int32, (sq, skv), 1)
      bias = jnp.where(col > row, f32(-1e30), f32(0.0))

    outs = []
    for b in range(bb):                    # static unroll over batch block
      qb = q16[b * sq:(b + 1) * sq]
      kb = k16[b * skv:(b + 1) * skv]
      vb = v16[b * skv:(b + 1) * skv]
      heads = []
      for h in range(nhead):               # static unroll over heads
        lo = h * d_k
        qh = qb[:, lo:lo + d_k]
        kh = kb[:, lo:lo + d_k]
        vh = vb[:, lo:lo + d_k]
        # Scores (Sq, Skv): Q @ K^T (scale folded into wq host-side).
        s = jax.lax.dot_general(qh, kh, (((1,), (1,)), ((), ())),
                                preferred_element_type=f32)
        if bias is not None:
          s = s + bias
        m = jnp.max(s, axis=-1, keepdims=True)
        e = jnp.exp(s - m)
        p = e * pl.reciprocal(jnp.sum(e, axis=-1, keepdims=True), approx=True)
        heads.append(jnp.dot(p.astype(cdt), vh, preferred_element_type=f32))
      outs.append(jnp.concatenate(heads, axis=-1))              # (Sq, D)
    y = outs[0] if bb == 1 else jnp.concatenate(outs, axis=0)   # (bb*Sq, D)
    # Output projection: ONE matmul contracting K = H*d_k = D (head reduction
    # happens on the MXU accumulator, no (H, Sq, D) temp).
    return (jnp.dot(y.astype(cdt), fcw_ref[...], preferred_element_type=f32)
            + fcb_ref[...])

  def add_norm(x, y, g_ref, b_ref):
    z = x + y
    mean = jnp.mean(z, axis=-1, keepdims=True)
    var = jnp.mean(jnp.square(z - mean), axis=-1, keepdims=True)
    return (z - mean) * jax.lax.rsqrt(var + eps) * g_ref[...] + b_ref[...]

  # masked self-attention + AddNorm1
  y1 = mha(xs, xs, sd, sd, wq1_ref, wk1_ref, wv1_ref, fcw1_ref, fcb1_ref, True)
  a1 = add_norm(xs, y1, g1_ref, b1_ref)
  # cross attention (Q from decoder, K/V from encoder) + AddNorm2
  y2 = mha(a1, enc, sd, se, wq2_ref, wk2_ref, wv2_ref, fcw2_ref, fcb2_ref, False)
  a2 = add_norm(a1, y2, g2_ref, b2_ref)
  # FFN (linear -> ReLU -> linear) + AddNorm3
  hid = jnp.dot(a2.astype(cdt), w1_ref[...], preferred_element_type=f32) + bb1_ref[...]
  hid = jnp.maximum(hid, 0.0)
  yf = jnp.dot(hid.astype(cdt), w2_ref[...], preferred_element_type=f32) + bb2_ref[...]
  a3 = add_norm(a2, yf, g3_ref, b3_ref)

  o_ref[...] = a3.reshape(bb, sd, d)


# ----------------------------------------------------------------------------
# Wrapper
# ----------------------------------------------------------------------------

def _pick_block_batch(batch):
  """Largest divisor of `batch` (capped at 8) that keeps >= 2 grid steps
  (v7x has 2 TensorCores); falls back to 1."""
  best = 1
  for cand in range(1, min(batch, 8) + 1):
    if batch % cand == 0 and (batch // cand >= 2 or batch == 1):
      best = cand
  return best


def _weight_spec(shape):
  nd = len(shape)
  idx = lambda b, _nd=nd: (0,) * _nd
  try:
    # Grid-resident weights (constant index map): single-buffer so the
    # resident footprint is not doubled (important on v7x's 64 MiB VMEM).
    return pl.BlockSpec(shape, idx, pipeline_mode=pl.Buffered(1))
  except (TypeError, AttributeError):
    return pl.BlockSpec(shape, idx)


@functools.partial(jax.jit, static_argnames=("nhead", "block_batch"))
def decoder_layer_forward(encode, xs, p, nhead, block_batch=None):
  B, Sd, D = xs.shape
  _, Se, _ = encode.shape
  d_k = D // nhead
  bb = _pick_block_batch(B) if block_batch is None else block_batch
  assert B % bb == 0, (B, bb)

  cdt = _COMPUTE_DTYPE
  scale = 1.0 / math.sqrt(d_k)

  m1, m2, ffn = p["mask_mha"], p["mha"], p["ffn"]
  g1, b1 = p["an1"]
  g2, b2 = p["an2"]
  g3, b3 = p["an3"]

  # Host/XLA-side weight prep (one-time, negligible): fold the 1/sqrt(d_k)
  # scale into Wq and cast matmul weights to bf16 (halves resident VMEM).
  args = (
      xs, encode,
      (m1["wq"] * scale).astype(cdt), m1["wk"].astype(cdt), m1["wv"].astype(cdt),
      m1["fcw"].astype(cdt), m1["fcb"], g1, b1,
      (m2["wq"] * scale).astype(cdt), m2["wk"].astype(cdt), m2["wv"].astype(cdt),
      m2["fcw"].astype(cdt), m2["fcb"], g2, b2,
      ffn["w1"].astype(cdt), ffn["b1"], ffn["w2"].astype(cdt), ffn["b2"], g3, b3,
  )

  in_specs = [
      pl.BlockSpec((bb, Sd, D), lambda b: (b, 0, 0)),   # xs
      pl.BlockSpec((bb, Se, D), lambda b: (b, 0, 0)),   # encode
  ] + [_weight_spec(a.shape) for a in args[2:]]          # resident weights

  kernel = functools.partial(_decoder_layer_kernel,
                             nhead=nhead, d_k=d_k, eps=1e-5)
  return pl.pallas_call(
      kernel,
      out_shape=jax.ShapeDtypeStruct((B, Sd, D), jnp.float32),
      grid=(B // bb,),
      in_specs=in_specs,
      out_specs=pl.BlockSpec((bb, Sd, D), lambda b: (b, 0, 0)),
      compiler_params=pltpu.CompilerParams(
          dimension_semantics=("parallel",),
          vmem_limit_bytes=48 * 1024 * 1024),
  )(*args)


# ----------------------------------------------------------------------------
# Parameter init (deterministic, PyTorch-default-like uniform bounds)
# ----------------------------------------------------------------------------

def _uniform(key, shape, fan_in):
  bound = 1.0 / math.sqrt(fan_in)
  return jax.random.uniform(key, shape, jnp.float32, -bound, bound)


def _init_mha(key, d_model):
  k1, k2, k3, k4, k5 = jax.random.split(key, 5)
  return dict(
      wq=_uniform(k1, (d_model, d_model), d_model),
      wk=_uniform(k2, (d_model, d_model), d_model),
      wv=_uniform(k3, (d_model, d_model), d_model),
      fcw=_uniform(k4, (d_model, d_model), d_model),
      fcb=_uniform(k5, (1, d_model), d_model),
  )


def _init_addnorm(d_model):
  return (jnp.ones((1, d_model), jnp.float32),
          jnp.zeros((1, d_model), jnp.float32))


def _init_ffn(key, d_model, dim_ff):
  k1, k2, k3, k4 = jax.random.split(key, 4)
  return dict(
      w1=_uniform(k1, (d_model, dim_ff), d_model),
      b1=_uniform(k2, (1, dim_ff), d_model),
      w2=_uniform(k3, (dim_ff, d_model), dim_ff),
      b2=_uniform(k4, (1, d_model), dim_ff),
  )


def init_decoder_layer(key, d_model, nhead, dim_ff):
  k1, k2, k3 = jax.random.split(key, 3)
  return dict(
      mask_mha=_init_mha(k1, d_model),
      an1=_init_addnorm(d_model),
      mha=_init_mha(k2, d_model),
      an2=_init_addnorm(d_model),
      ffn=_init_ffn(k3, d_model, dim_ff),
      an3=_init_addnorm(d_model),
  )


# ----------------------------------------------------------------------------

if __name__ == "__main__":
  d_model = 32
  nhead = 4
  dim_feedforward = 64
  batch, enc_seq, dec_seq = 2, 16, 8

  key = jax.random.PRNGKey(0)
  kp, ke, kx = jax.random.split(key, 3)
  params = init_decoder_layer(kp, d_model, nhead, dim_feedforward)
  encode = jax.random.normal(ke, (batch, enc_seq, d_model), jnp.float32)
  xs = jax.random.normal(kx, (batch, dec_seq, d_model), jnp.float32)

  out = decoder_layer_forward(encode, xs, params, nhead)
  out = jax.block_until_ready(out)

  assert out.shape == (batch, dec_seq, d_model), out.shape
  assert bool(jnp.all(jnp.isfinite(out)))
  print("KERNEL_OK")
</pallas_src>

<mosaic_0001>
module attributes {stable_mosaic.version = 11 : i64} {
  func.func @_decoder_layer_kernel(%arg0: i32, %arg1: memref<1x8x32xf32, #tpu.memory_space<vmem>>, %arg2: memref<1x16x32xf32, #tpu.memory_space<vmem>>, %arg3: memref<32x32xbf16, #tpu.memory_space<vmem>>, %arg4: memref<32x32xbf16, #tpu.memory_space<vmem>>, %arg5: memref<32x32xbf16, #tpu.memory_space<vmem>>, %arg6: memref<32x32xbf16, #tpu.memory_space<vmem>>, %arg7: memref<1x32xf32, #tpu.memory_space<vmem>>, %arg8: memref<1x32xf32, #tpu.memory_space<vmem>>, %arg9: memref<1x32xf32, #tpu.memory_space<vmem>>, %arg10: memref<32x32xbf16, #tpu.memory_space<vmem>>, %arg11: memref<32x32xbf16, #tpu.memory_space<vmem>>, %arg12: memref<32x32xbf16, #tpu.memory_space<vmem>>, %arg13: memref<32x32xbf16, #tpu.memory_space<vmem>>, %arg14: memref<1x32xf32, #tpu.memory_space<vmem>>, %arg15: memref<1x32xf32, #tpu.memory_space<vmem>>, %arg16: memref<1x32xf32, #tpu.memory_space<vmem>>, %arg17: memref<32x64xbf16, #tpu.memory_space<vmem>>, %arg18: memref<1x64xf32, #tpu.memory_space<vmem>>, %arg19: memref<64x32xbf16, #tpu.memory_space<vmem>>, %arg20: memref<1x32xf32, #tpu.memory_space<vmem>>, %arg21: memref<1x32xf32, #tpu.memory_space<vmem>>, %arg22: memref<1x32xf32, #tpu.memory_space<vmem>>, %arg23: memref<1x8x32xf32, #tpu.memory_space<vmem>>) attributes {dimension_semantics = [#tpu.dimension_semantics<parallel>], iteration_bounds = array<i64: 2>, scalar_prefetch = 0 : i64, scratch_operands = 0 : i64, tpu.core_type = #tpu.core_type<tc>, window_params = [{transform_indices = @transform_0, window_bounds = array<i64: 1, 8, 32>}, {transform_indices = @transform_1, window_bounds = array<i64: 1, 16, 32>}, {pipeline_mode = #tpu.pipeline_mode<synchronous>, transform_indices = @transform_2, window_bounds = array<i64: 32, 32>}, {pipeline_mode = #tpu.pipeline_mode<synchronous>, transform_indices = @transform_3, window_bounds = array<i64: 32, 32>}, {pipeline_mode = #tpu.pipeline_mode<synchronous>, transform_indices = @transform_4, window_bounds = array<i64: 32, 32>}, {pipeline_mode = #tpu.pipeline_mode<synchronous>, transform_indices = @transform_5, window_bounds = array<i64: 32, 32>}, {pipeline_mode = #tpu.pipeline_mode<synchronous>, transform_indices = @transform_6, window_bounds = array<i64: 1, 32>}, {pipeline_mode = #tpu.pipeline_mode<synchronous>, transform_indices = @transform_7, window_bounds = array<i64: 1, 32>}, {pipeline_mode = #tpu.pipeline_mode<synchronous>, transform_indices = @transform_8, window_bounds = array<i64: 1, 32>}, {pipeline_mode = #tpu.pipeline_mode<synchronous>, transform_indices = @transform_9, window_bounds = array<i64: 32, 32>}, {pipeline_mode = #tpu.pipeline_mode<synchronous>, transform_indices = @transform_10, window_bounds = array<i64: 32, 32>}, {pipeline_mode = #tpu.pipeline_mode<synchronous>, transform_indices = @transform_11, window_bounds = array<i64: 32, 32>}, {pipeline_mode = #tpu.pipeline_mode<synchronous>, transform_indices = @transform_12, window_bounds = array<i64: 32, 32>}, {pipeline_mode = #tpu.pipeline_mode<synchronous>, transform_indices = @transform_13, window_bounds = array<i64: 1, 32>}, {pipeline_mode = #tpu.pipeline_mode<synchronous>, transform_indices = @transform_14, window_bounds = array<i64: 1, 32>}, {pipeline_mode = #tpu.pipeline_mode<synchronous>, transform_indices = @transform_15, window_bounds = array<i64: 1, 32>}, {pipeline_mode = #tpu.pipeline_mode<synchronous>, transform_indices = @transform_16, window_bounds = array<i64: 32, 64>}, {pipeline_mode = #tpu.pipeline_mode<synchronous>, transform_indices = @transform_17, window_bounds = array<i64: 1, 64>}, {pipeline_mode = #tpu.pipeline_mode<synchronous>, transform_indices = @transform_18, window_bounds = array<i64: 64, 32>}, {pipeline_mode = #tpu.pipeline_mode<synchronous>, transform_indices = @transform_19, window_bounds = array<i64: 1, 32>}, {pipeline_mode = #tpu.pipeline_mode<synchronous>, transform_indices = @transform_20, window_bounds = array<i64: 1, 32>}, {pipeline_mode = #tpu.pipeline_mode<synchronous>, transform_indices = @transform_21, window_bounds = array<i64: 1, 32>}, {transform_indices = @transform_22, window_bounds = array<i64: 1, 8, 32>}]} {
    %c0 = arith.constant 0 : index
    %c0_0 = arith.constant 0 : index
    %c0_1 = arith.constant 0 : index
    %0 = vector.load %arg1[%c0, %c0_0, %c0_1] : memref<1x8x32xf32, #tpu.memory_space<vmem>>, vector<1x8x32xf32>
    %1 = vector.shape_cast %0 : vector<1x8x32xf32> to vector<8x32xf32>
    %c0_2 = arith.constant 0 : index
    %c0_3 = arith.constant 0 : index
    %c0_4 = arith.constant 0 : index
    %2 = vector.load %arg2[%c0_2, %c0_3, %c0_4] : memref<1x16x32xf32, #tpu.memory_space<vmem>>, vector<1x16x32xf32>
    %3 = vector.shape_cast %2 : vector<1x16x32xf32> to vector<16x32xf32>
    %4 = arith.truncf %1 : vector<8x32xf32> to vector<8x32xbf16>
    %c0_5 = arith.constant 0 : index
    %c0_6 = arith.constant 0 : index
    %5 = vector.load %arg3[%c0_5, %c0_6] : memref<32x32xbf16, #tpu.memory_space<vmem>>, vector<32x32xbf16>
    %cst = arith.constant dense<0.000000e+00> : vector<8x32xf32>
    %6 = tpu.matmul %4, %5, %cst {dimension_numbers = #tpu.dot_dimension_numbers<[1], [0], [0], [1], [0, 0, 1, 1], [], []>} : vector<8x32xbf16>, vector<32x32xbf16>, vector<8x32xf32> -> vector<8x32xf32>
    %7 = arith.truncf %1 : vector<8x32xf32> to vector<8x32xbf16>
    %c0_7 = arith.constant 0 : index
    %c0_8 = arith.constant 0 : index
    %8 = vector.load %arg4[%c0_7, %c0_8] : memref<32x32xbf16, #tpu.memory_space<vmem>>, vector<32x32xbf16>
    %cst_9 = arith.constant dense<0.000000e+00> : vector<8x32xf32>
    %9 = tpu.matmul %7, %8, %cst_9 {dimension_numbers = #tpu.dot_dimension_numbers<[1], [0], [0], [1], [0, 0, 1, 1], [], []>} : vector<8x32xbf16>, vector<32x32xbf16>, vector<8x32xf32> -> vector<8x32xf32>
    %10 = arith.truncf %1 : vector<8x32xf32> to vector<8x32xbf16>
    %c0_10 = arith.constant 0 : index
    %c0_11 = arith.constant 0 : index
    %11 = vector.load %arg5[%c0_10, %c0_11] : memref<32x32xbf16, #tpu.memory_space<vmem>>, vector<32x32xbf16>
    %cst_12 = arith.constant dense<0.000000e+00> : vector<8x32xf32>
    %12 = tpu.matmul %10, %11, %cst_12 {dimension_numbers = #tpu.dot_dimension_numbers<[1], [0], [0], [1], [0, 0, 1, 1], [], []>} : vector<8x32xbf16>, vector<32x32xbf16>, vector<8x32xf32> -> vector<8x32xf32>
    %13 = arith.truncf %6 : vector<8x32xf32> to vector<8x32xbf16>
    %14 = arith.truncf %9 : vector<8x32xf32> to vector<8x32xbf16>
    %15 = arith.truncf %12 : vector<8x32xf32> to vector<8x32xbf16>
    %16 = tpu.iota {dimensions = array<i32: 0>} : vector<8x8xi32>
    %17 = tpu.iota {dimensions = array<i32: 1>} : vector<8x8xi32>
    %18 = arith.cmpi sgt, %17, %16 : vector<8x8xi32>
    %cst_13 = arith.constant -1.000000e+30 : f32
    %cst_14 = arith.constant 0.000000e+00 : f32
    %19 = vector.broadcast %cst_13 : f32 to vector<8x8xf32>
    %20 = vector.broadcast %cst_14 : f32 to vector<8x8xf32>
    %21 = arith.select %18, %19, %20 : vector<8x8xi1>, vector<8x8xf32>
    %22 = vector.extract_strided_slice %13 {offsets = [0, 0], sizes = [8, 8], strides = [1, 1]} : vector<8x32xbf16> to vector<8x8xbf16>
    %23 = vector.extract_strided_slice %14 {offsets = [0, 0], sizes = [8, 8], strides = [1, 1]} : vector<8x32xbf16> to vector<8x8xbf16>
    %24 = vector.extract_strided_slice %15 {offsets = [0, 0], sizes = [8, 8], strides = [1, 1]} : vector<8x32xbf16> to vector<8x8xbf16>
    %cst_15 = arith.constant dense<0.000000e+00> : vector<8x8xf32>
    %25 = tpu.matmul %22, %23, %cst_15 {dimension_numbers = #tpu.dot_dimension_numbers<[1], [1], [0], [0], [0, 0, 1, 0], [], []>} : vector<8x8xbf16>, vector<8x8xbf16>, vector<8x8xf32> -> vector<8x8xf32>
    %26 = arith.addf %25, %21 : vector<8x8xf32>
    %cst_16 = arith.constant dense<0xFF800000> : vector<8xf32>
    %27 = vector.multi_reduction <maximumf>, %26, %cst_16 [1] : vector<8x8xf32> to vector<8xf32>
    %28 = vector.shape_cast %27 : vector<8xf32> to vector<8x1xf32>
    %29 = vector.broadcast %28 : vector<8x1xf32> to vector<8x8xf32>
    %30 = arith.subf %26, %29 : vector<8x8xf32>
    %31 = math.exp %30 : vector<8x8xf32>
    %cst_17 = arith.constant dense<0.000000e+00> : vector<8xf32>
    %32 = vector.multi_reduction <add>, %31, %cst_17 [1] : vector<8x8xf32> to vector<8xf32>
    %33 = vector.shape_cast %32 : vector<8xf32> to vector<8x1xf32>
    %34 = tpu.reciprocal %33 {approx = true} : vector<8x1xf32> -> vector<8x1xf32>
    %35 = vector.broadcast %34 : vector<8x1xf32> to vector<8x8xf32>
    %36 = arith.mulf %31, %35 : vector<8x8xf32>
    %37 = arith.truncf %36 : vector<8x8xf32> to vector<8x8xbf16>
    %cst_18 = arith.constant dense<0.000000e+00> : vector<8x8xf32>
    %38 = tpu.matmul %37, %24, %cst_18 {dimension_numbers = #tpu.dot_dimension_numbers<[1], [0], [0], [1], [0, 0, 1, 1], [], []>} : vector<8x8xbf16>, vector<8x8xbf16>, vector<8x8xf32> -> vector<8x8xf32>
    %39 = vector.extract_strided_slice %13 {offsets = [0, 8], sizes = [8, 8], strides = [1, 1]} : vector<8x32xbf16> to vector<8x8xbf16>
    %40 = vector.extract_strided_slice %14 {offsets = [0, 8], sizes = [8, 8], strides = [1, 1]} : vector<8x32xbf16> to vector<8x8xbf16>
    %41 = vector.extract_strided_slice %15 {offsets = [0, 8], sizes = [8, 8], strides = [1, 1]} : vector<8x32xbf16> to vector<8x8xbf16>
    %cst_19 = arith.constant dense<0.000000e+00> : vector<8x8xf32>
    %42 = tpu.matmul %39, %40, %cst_19 {dimension_numbers = #tpu.dot_dimension_numbers<[1], [1], [0], [0], [0, 0, 1, 0], [], []>} : vector<8x8xbf16>, vector<8x8xbf16>, vector<8x8xf32> -> vector<8x8xf32>
    %43 = arith.addf %42, %21 : vector<8x8xf32>
    %cst_20 = arith.constant dense<0xFF800000> : vector<8xf32>
    %44 = vector.multi_reduction <maximumf>, %43, %cst_20 [1] : vector<8x8xf32> to vector<8xf32>
    %45 = vector.shape_cast %44 : vector<8xf32> to vector<8x1xf32>
    %46 = vector.broadcast %45 : vector<8x1xf32> to vector<8x8xf32>
    %47 = arith.subf %43, %46 : vector<8x8xf32>
    %48 = math.exp %47 : vector<8x8xf32>
    %cst_21 = arith.constant dense<0.000000e+00> : vector<8xf32>
    %49 = vector.multi_reduction <add>, %48, %cst_21 [1] : vector<8x8xf32> to vector<8xf32>
    %50 = vector.shape_cast %49 : vector<8xf32> to vector<8x1xf32>
    %51 = tpu.reciprocal %50 {approx = true} : vector<8x1xf32> -> vector<8x1xf32>
    %52 = vector.broadcast %51 : vector<8x1xf32> to vector<8x8xf32>
    %53 = arith.mulf %48, %52 : vector<8x8xf32>
    %54 = arith.truncf %53 : vector<8x8xf32> to vector<8x8xbf16>
    %cst_22 = arith.constant dense<0.000000e+00> : vector<8x8xf32>
    %55 = tpu.matmul %54, %41, %cst_22 {dimension_numbers = #tpu.dot_dimension_numbers<[1], [0], [0], [1], [0, 0, 1, 1], [], []>} : vector<8x8xbf16>, vector<8x8xbf16>, vector<8x8xf32> -> vector<8x8xf32>
    %56 = vector.extract_strided_slice %13 {offsets = [0, 16], sizes = [8, 8], strides = [1, 1]} : vector<8x32xbf16> to vector<8x8xbf16>
    %57 = vector.extract_strided_slice %14 {offsets = [0, 16], sizes = [8, 8], strides = [1, 1]} : vector<8x32xbf16> to vector<8x8xbf16>
    %58 = vector.extract_strided_slice %15 {offsets = [0, 16], sizes = [8, 8], strides = [1, 1]} : vector<8x32xbf16> to vector<8x8xbf16>
    %cst_23 = arith.constant dense<0.000000e+00> : vector<8x8xf32>
    %59 = tpu.matmul %56, %57, %cst_23 {dimension_numbers = #tpu.dot_dimension_numbers<[1], [1], [0], [0], [0, 0, 1, 0], [], []>} : vector<8x8xbf16>, vector<8x8xbf16>, vector<8x8xf32> -> vector<8x8xf32>
    %60 = arith.addf %59, %21 : vector<8x8xf32>
    %cst_24 = arith.constant dense<0xFF800000> : vector<8xf32>
    %61 = vector.multi_reduction <maximumf>, %60, %cst_24 [1] : vector<8x8xf32> to vector<8xf32>
    %62 = vector.shape_cast %61 : vector<8xf32> to vector<8x1xf32>
    %63 = vector.broadcast %62 : vector<8x1xf32> to vector<8x8xf32>
    %64 = arith.subf %60, %63 : vector<8x8xf32>
    %65 = math.exp %64 : vector<8x8xf32>
    %cst_25 = arith.constant dense<0.000000e+00> : vector<8xf32>
    %66 = vector.multi_reduction <add>, %65, %cst_25 [1] : vector<8x8xf32> to vector<8xf32>
    %67 = vector.shape_cast %66 : vector<8xf32> to vector<8x1xf32>
    %68 = tpu.reciprocal %67 {approx = true} : vector<8x1xf32> -> vector<8x1xf32>
    %69 = vector.broadcast %68 : vector<8x1xf32> to vector<8x8xf32>
    %70 = arith.mulf %65, %69 : vector<8x8xf32>
    %71 = arith.truncf %70 : vector<8x8xf32> to vector<8x8xbf16>
    %cst_26 = arith.constant dense<0.000000e+00> : vector<8x8xf32>
    %72 = tpu.matmul %71, %58, %cst_26 {dimension_numbers = #tpu.dot_dimension_numbers<[1], [0], [0], [1], [0, 0, 1, 1], [], []>} : vector<8x8xbf16>, vector<8x8xbf16>, vector<8x8xf32> -> vector<8x8xf32>
    %73 = vector.extract_strided_slice %13 {offsets = [0, 24], sizes = [8, 8], strides = [1, 1]} : vector<8x32xbf16> to vector<8x8xbf16>
    %74 = vector.extract_strided_slice %14 {offsets = [0, 24], sizes = [8, 8], strides = [1, 1]} : vector<8x32xbf16> to vector<8x8xbf16>
    %75 = vector.extract_strided_slice %15 {offsets = [0, 24], sizes = [8, 8], strides = [1, 1]} : vector<8x32xbf16> to vector<8x8xbf16>
    %cst_27 = arith.constant dense<0.000000e+00> : vector<8x8xf32>
    %76 = tpu.matmul %73, %74, %cst_27 {dimension_numbers = #tpu.dot_dimension_numbers<[1], [1], [0], [0], [0, 0, 1, 0], [], []>} : vector<8x8xbf16>, vector<8x8xbf16>, vector<8x8xf32> -> vector<8x8xf32>
    %77 = arith.addf %76, %21 : vector<8x8xf32>
    %cst_28 = arith.constant dense<0xFF800000> : vector<8xf32>
    %78 = vector.multi_reduction <maximumf>, %77, %cst_28 [1] : vector<8x8xf32> to vector<8xf32>
    %79 = vector.shape_cast %78 : vector<8xf32> to vector<8x1xf32>
    %80 = vector.broadcast %79 : vector<8x1xf32> to vector<8x8xf32>
    %81 = arith.subf %77, %80 : vector<8x8xf32>
    %82 = math.exp %81 : vector<8x8xf32>
    %cst_29 = arith.constant dense<0.000000e+00> : vector<8xf32>
    %83 = vector.multi_reduction <add>, %82, %cst_29 [1] : vector<8x8xf32> to vector<8xf32>
    %84 = vector.shape_cast %83 : vector<8xf32> to vector<8x1xf32>
    %85 = tpu.reciprocal %84 {approx = true} : vector<8x1xf32> -> vector<8x1xf32>
    %86 = vector.broadcast %85 : vector<8x1xf32> to vector<8x8xf32>
    %87 = arith.mulf %82, %86 : vector<8x8xf32>
    %88 = arith.truncf %87 : vector<8x8xf32> to vector<8x8xbf16>
    %cst_30 = arith.constant dense<0.000000e+00> : vector<8x8xf32>
    %89 = tpu.matmul %88, %75, %cst_30 {dimension_numbers = #tpu.dot_dimension_numbers<[1], [0], [0], [1], [0, 0, 1, 1], [], []>} : vector<8x8xbf16>, vector<8x8xbf16>, vector<8x8xf32> -> vector<8x8xf32>
    %90 = tpu.concatenate %38, %55, %72, %89 in 1 : vector<8x8xf32>, vector<8x8xf32>, vector<8x8xf32>, vector<8x8xf32> -> vector<8x32xf32>
    %91 = arith.truncf %90 : vector<8x32xf32> to vector<8x32xbf16>
    %c0_31 = arith.constant 0 : index
    %c0_32 = arith.constant 0 : index
    %92 = vector.load %arg6[%c0_31, %c0_32] : memref<32x32xbf16, #tpu.memory_space<vmem>>, vector<32x32xbf16>
    %cst_33 = arith.constant dense<0.000000e+00> : vector<8x32xf32>
    %93 = tpu.matmul %91, %92, %cst_33 {dimension_numbers = #tpu.dot_dimension_numbers<[1], [0], [0], [1], [0, 0, 1, 1], [], []>} : vector<8x32xbf16>, vector<32x32xbf16>, vector<8x32xf32> -> vector<8x32xf32>
    %c0_34 = arith.constant 0 : index
    %c0_35 = arith.constant 0 : index
    %94 = vector.load %arg7[%c0_34, %c0_35] : memref<1x32xf32, #tpu.memory_space<vmem>>, vector<1x32xf32>
    %95 = vector.broadcast %94 : vector<1x32xf32> to vector<8x32xf32>
    %96 = arith.addf %93, %95 : vector<8x32xf32>
    %97 = arith.addf %1, %96 : vector<8x32xf32>
    %cst_36 = arith.constant dense<0.000000e+00> : vector<8xf32>
    %98 = vector.multi_reduction <add>, %97, %cst_36 [1] : vector<8x32xf32> to vector<8xf32>
    %99 = vector.shape_cast %98 : vector<8xf32> to vector<8x1xf32>
    %cst_37 = arith.constant 3.200000e+01 : f32
    %100 = vector.broadcast %cst_37 : f32 to vector<8x1xf32>
    %101 = arith.divf %99, %100 : vector<8x1xf32>
    %102 = vector.broadcast %101 : vector<8x1xf32> to vector<8x32xf32>
    %103 = arith.subf %97, %102 : vector<8x32xf32>
    %104 = arith.mulf %103, %103 : vector<8x32xf32>
    %cst_38 = arith.constant dense<0.000000e+00> : vector<8xf32>
    %105 = vector.multi_reduction <add>, %104, %cst_38 [1] : vector<8x32xf32> to vector<8xf32>
    %106 = vector.shape_cast %105 : vector<8xf32> to vector<8x1xf32>
    %cst_39 = arith.constant 3.200000e+01 : f32
    %107 = vector.broadcast %cst_39 : f32 to vector<8x1xf32>
    %108 = arith.divf %106, %107 : vector<8x1xf32>
    %109 = vector.broadcast %101 : vector<8x1xf32> to vector<8x32xf32>
    %110 = arith.subf %97, %109 : vector<8x32xf32>
    %cst_40 = arith.constant 9.99999974E-6 : f32
    %111 = vector.broadcast %cst_40 : f32 to vector<8x1xf32>
    %112 = arith.addf %108, %111 : vector<8x1xf32>
    %113 = math.rsqrt %112 : vector<8x1xf32>
    %114 = vector.broadcast %113 : vector<8x1xf32> to vector<8x32xf32>
    %115 = arith.mulf %110, %114 : vector<8x32xf32>
    %c0_41 = arith.constant 0 : index
    %c0_42 = arith.constant 0 : index
    %116 = vector.load %arg8[%c0_41, %c0_42] : memref<1x32xf32, #tpu.memory_space<vmem>>, vector<1x32xf32>
    %117 = vector.broadcast %116 : vector<1x32xf32> to vector<8x32xf32>
    %118 = arith.mulf %115, %117 : vector<8x32xf32>
    %c0_43 = arith.constant 0 : index
    %c0_44 = arith.constant 0 : index
    %119 = vector.load %arg9[%c0_43, %c0_44] : memref<1x32xf32, #tpu.memory_space<vmem>>, vector<1x32xf32>
    %120 = vector.broadcast %119 : vector<1x32xf32> to vector<8x32xf32>
    %121 = arith.addf %118, %120 : vector<8x32xf32>
    %122 = arith.truncf %121 : vector<8x32xf32> to vector<8x32xbf16>
    %c0_45 = arith.constant 0 : index
    %c0_46 = arith.constant 0 : index
    %123 = vector.load %arg10[%c0_45, %c0_46] : memref<32x32xbf16, #tpu.memory_space<vmem>>, vector<32x32xbf16>
    %cst_47 = arith.constant dense<0.000000e+00> : vector<8x32xf32>
    %124 = tpu.matmul %122, %123, %cst_47 {dimension_numbers = #tpu.dot_dimension_numbers<[1], [0], [0], [1], [0, 0, 1, 1], [], []>} : vector<8x32xbf16>, vector<32x32xbf16>, vector<8x32xf32> -> vector<8x32xf32>
    %125 = arith.truncf %3 : vector<16x32xf32> to vector<16x32xbf16>
    %c0_48 = arith.constant 0 : index
    %c0_49 = arith.constant 0 : index
    %126 = vector.load %arg11[%c0_48, %c0_49] : memref<32x32xbf16, #tpu.memory_space<vmem>>, vector<32x32xbf16>
    %cst_50 = arith.constant dense<0.000000e+00> : vector<16x32xf32>
    %127 = tpu.matmul %125, %126, %cst_50 {dimension_numbers = #tpu.dot_dimension_numbers<[1], [0], [0], [1], [0, 0, 1, 1], [], []>} : vector<16x32xbf16>, vector<32x32xbf16>, vector<16x32xf32> -> vector<16x32xf32>
    %128 = arith.truncf %3 : vector<16x32xf32> to vector<16x32xbf16>
    %c0_51 = arith.constant 0 : index
    %c0_52 = arith.constant 0 : index
    %129 = vector.load %arg12[%c0_51, %c0_52] : memref<32x32xbf16, #tpu.memory_space<vmem>>, vector<32x32xbf16>
    %cst_53 = arith.constant dense<0.000000e+00> : vector<16x32xf32>
    %130 = tpu.matmul %128, %129, %cst_53 {dimension_numbers = #tpu.dot_dimension_numbers<[1], [0], [0], [1], [0, 0, 1, 1], [], []>} : vector<16x32xbf16>, vector<32x32xbf16>, vector<16x32xf32> -> vector<16x32xf32>
    %131 = arith.truncf %124 : vector<8x32xf32> to vector<8x32xbf16>
    %132 = arith.truncf %127 : vector<16x32xf32> to vector<16x32xbf16>
    %133 = arith.truncf %130 : vector<16x32xf32> to vector<16x32xbf16>
    %134 = vector.extract_strided_slice %131 {offsets = [0, 0], sizes = [8, 8], strides = [1, 1]} : vector<8x32xbf16> to vector<8x8xbf16>
    %135 = vector.extract_strided_slice %132 {offsets = [0, 0], sizes = [16, 8], strides = [1, 1]} : vector<16x32xbf16> to vector<16x8xbf16>
    %136 = vector.extract_strided_slice %133 {offsets = [0, 0], sizes = [16, 8], strides = [1, 1]} : vector<16x32xbf16> to vector<16x8xbf16>
    %cst_54 = arith.constant dense<0.000000e+00> : vector<8x16xf32>
    %137 = tpu.matmul %134, %135, %cst_54 {dimension_numbers = #tpu.dot_dimension_numbers<[1], [1], [0], [0], [0, 0, 1, 0], [], []>} : vector<8x8xbf16>, vector<16x8xbf16>, vector<8x16xf32> -> vector<8x16xf32>
    %cst_55 = arith.constant dense<0xFF800000> : vector<8xf32>
    %138 = vector.multi_reduction <maximumf>, %137, %cst_55 [1] : vector<8x16xf32> to vector<8xf32>
    %139 = vector.shape_cast %138 : vector<8xf32> to vector<8x1xf32>
    %140 = vector.broadcast %139 : vector<8x1xf32> to vector<8x16xf32>
    %141 = arith.subf %137, %140 : vector<8x16xf32>
    %142 = math.exp %141 : vector<8x16xf32>
    %cst_56 = arith.constant dense<0.000000e+00> : vector<8xf32>
    %143 = vector.multi_reduction <add>, %142, %cst_56 [1] : vector<8x16xf32> to vector<8xf32>
    %144 = vector.shape_cast %143 : vector<8xf32> to vector<8x1xf32>
    %145 = tpu.reciprocal %144 {approx = true} : vector<8x1xf32> -> vector<8x1xf32>
    %146 = vector.broadcast %145 : vector<8x1xf32> to vector<8x16xf32>
    %147 = arith.mulf %142, %146 : vector<8x16xf32>
    %148 = arith.truncf %147 : vector<8x16xf32> to vector<8x16xbf16>
    %cst_57 = arith.constant dense<0.000000e+00> : vector<8x8xf32>
    %149 = tpu.matmul %148, %136, %cst_57 {dimension_numbers = #tpu.dot_dimension_numbers<[1], [0], [0], [1], [0, 0, 1, 1], [], []>} : vector<8x16xbf16>, vector<16x8xbf16>, vector<8x8xf32> -> vector<8x8xf32>
    %150 = vector.extract_strided_slice %131 {offsets = [0, 8], sizes = [8, 8], strides = [1, 1]} : vector<8x32xbf16> to vector<8x8xbf16>
    %151 = vector.extract_strided_slice %132 {offsets = [0, 8], sizes = [16, 8], strides = [1, 1]} : vector<16x32xbf16> to vector<16x8xbf16>
    %152 = vector.extract_strided_slice %133 {offsets = [0, 8], sizes = [16, 8], strides = [1, 1]} : vector<16x32xbf16> to vector<16x8xbf16>
    %cst_58 = arith.constant dense<0.000000e+00> : vector<8x16xf32>
    %153 = tpu.matmul %150, %151, %cst_58 {dimension_numbers = #tpu.dot_dimension_numbers<[1], [1], [0], [0], [0, 0, 1, 0], [], []>} : vector<8x8xbf16>, vector<16x8xbf16>, vector<8x16xf32> -> vector<8x16xf32>
    %cst_59 = arith.constant dense<0xFF800000> : vector<8xf32>
    %154 = vector.multi_reduction <maximumf>, %153, %cst_59 [1] : vector<8x16xf32> to vector<8xf32>
    %155 = vector.shape_cast %154 : vector<8xf32> to vector<8x1xf32>
    %156 = vector.broadcast %155 : vector<8x1xf32> to vector<8x16xf32>
    %157 = arith.subf %153, %156 : vector<8x16xf32>
    %158 = math.exp %157 : vector<8x16xf32>
    %cst_60 = arith.constant dense<0.000000e+00> : vector<8xf32>
    %159 = vector.multi_reduction <add>, %158, %cst_60 [1] : vector<8x16xf32> to vector<8xf32>
    %160 = vector.shape_cast %159 : vector<8xf32> to vector<8x1xf32>
    %161 = tpu.reciprocal %160 {approx = true} : vector<8x1xf32> -> vector<8x1xf32>
    %162 = vector.broadcast %161 : vector<8x1xf32> to vector<8x16xf32>
    %163 = arith.mulf %158, %162 : vector<8x16xf32>
    %164 = arith.truncf %163 : vector<8x16xf32> to vector<8x16xbf16>
    %cst_61 = arith.constant dense<0.000000e+00> : vector<8x8xf32>
    %165 = tpu.matmul %164, %152, %cst_61 {dimension_numbers = #tpu.dot_dimension_numbers<[1], [0], [0], [1], [0, 0, 1, 1], [], []>} : vector<8x16xbf16>, vector<16x8xbf16>, vector<8x8xf32> -> vector<8x8xf32>
    %166 = vector.extract_strided_slice %131 {offsets = [0, 16], sizes = [8, 8], strides = [1, 1]} : vector<8x32xbf16> to vector<8x8xbf16>
    %167 = vector.extract_strided_slice %132 {offsets = [0, 16], sizes = [16, 8], strides = [1, 1]} : vector<16x32xbf16> to vector<16x8xbf16>
    %168 = vector.extract_strided_slice %133 {offsets = [0, 16], sizes = [16, 8], strides = [1, 1]} : vector<16x32xbf16> to vector<16x8xbf16>
    %cst_62 = arith.constant dense<0.000000e+00> : vector<8x16xf32>
    %169 = tpu.matmul %166, %167, %cst_62 {dimension_numbers = #tpu.dot_dimension_numbers<[1], [1], [0], [0], [0, 0, 1, 0], [], []>} : vector<8x8xbf16>, vector<16x8xbf16>, vector<8x16xf32> -> vector<8x16xf32>
    %cst_63 = arith.constant dense<0xFF800000> : vector<8xf32>
    %170 = vector.multi_reduction <maximumf>, %169, %cst_63 [1] : vector<8x16xf32> to vector<8xf32>
    %171 = vector.shape_cast %170 : vector<8xf32> to vector<8x1xf32>
    %172 = vector.broadcast %171 : vector<8x1xf32> to vector<8x16xf32>
    %173 = arith.subf %169, %172 : vector<8x16xf32>
    %174 = math.exp %173 : vector<8x16xf32>
    %cst_64 = arith.constant dense<0.000000e+00> : vector<8xf32>
    %175 = vector.multi_reduction <add>, %174, %cst_64 [1] : vector<8x16xf32> to vector<8xf32>
    %176 = vector.shape_cast %175 : vector<8xf32> to vector<8x1xf32>
    %177 = tpu.reciprocal %176 {approx = true} : vector<8x1xf32> -> vector<8x1xf32>
    %178 = vector.broadcast %177 : vector<8x1xf32> to vector<8x16xf32>
    %179 = arith.mulf %174, %178 : vector<8x16xf32>
    %180 = arith.truncf %179 : vector<8x16xf32> to vector<8x16xbf16>
    %cst_65 = arith.constant dense<0.000000e+00> : vector<8x8xf32>
    %181 = tpu.matmul %180, %168, %cst_65 {dimension_numbers = #tpu.dot_dimension_numbers<[1], [0], [0], [1], [0, 0, 1, 1], [], []>} : vector<8x16xbf16>, vector<16x8xbf16>, vector<8x8xf32> -> vector<8x8xf32>
    %182 = vector.extract_strided_slice %131 {offsets = [0, 24], sizes = [8, 8], strides = [1, 1]} : vector<8x32xbf16> to vector<8x8xbf16>
    %183 = vector.extract_strided_slice %132 {offsets = [0, 24], sizes = [16, 8], strides = [1, 1]} : vector<16x32xbf16> to vector<16x8xbf16>
    %184 = vector.extract_strided_slice %133 {offsets = [0, 24], sizes = [16, 8], strides = [1, 1]} : vector<16x32xbf16> to vector<16x8xbf16>
    %cst_66 = arith.constant dense<0.000000e+00> : vector<8x16xf32>
    %185 = tpu.matmul %182, %183, %cst_66 {dimension_numbers = #tpu.dot_dimension_numbers<[1], [1], [0], [0], [0, 0, 1, 0], [], []>} : vector<8x8xbf16>, vector<16x8xbf16>, vector<8x16xf32> -> vector<8x16xf32>
    %cst_67 = arith.constant dense<0xFF800000> : vector<8xf32>
    %186 = vector.multi_reduction <maximumf>, %185, %cst_67 [1] : vector<8x16xf32> to vector<8xf32>
    %187 = vector.shape_cast %186 : vector<8xf32> to vector<8x1xf32>
    %188 = vector.broadcast %187 : vector<8x1xf32> to vector<8x16xf32>
    %189 = arith.subf %185, %188 : vector<8x16xf32>
    %190 = math.exp %189 : vector<8x16xf32>
    %cst_68 = arith.constant dense<0.000000e+00> : vector<8xf32>
    %191 = vector.multi_reduction <add>, %190, %cst_68 [1] : vector<8x16xf32> to vector<8xf32>
    %192 = vector.shape_cast %191 : vector<8xf32> to vector<8x1xf32>
    %193 = tpu.reciprocal %192 {approx = true} : vector<8x1xf32> -> vector<8x1xf32>
    %194 = vector.broadcast %193 : vector<8x1xf32> to vector<8x16xf32>
    %195 = arith.mulf %190, %194 : vector<8x16xf32>
    %196 = arith.truncf %195 : vector<8x16xf32> to vector<8x16xbf16>
    %cst_69 = arith.constant dense<0.000000e+00> : vector<8x8xf32>
    %197 = tpu.matmul %196, %184, %cst_69 {dimension_numbers = #tpu.dot_dimension_numbers<[1], [0], [0], [1], [0, 0, 1, 1], [], []>} : vector<8x16xbf16>, vector<16x8xbf16>, vector<8x8xf32> -> vector<8x8xf32>
    %198 = tpu.concatenate %149, %165, %181, %197 in 1 : vector<8x8xf32>, vector<8x8xf32>, vector<8x8xf32>, vector<8x8xf32> -> vector<8x32xf32>
    %199 = arith.truncf %198 : vector<8x32xf32> to vector<8x32xbf16>
    %c0_70 = arith.constant 0 : index
    %c0_71 = arith.constant 0 : index
    %200 = vector.load %arg13[%c0_70, %c0_71] : memref<32x32xbf16, #tpu.memory_space<vmem>>, vector<32x32xbf16>
    %cst_72 = arith.constant dense<0.000000e+00> : vector<8x32xf32>
    %201 = tpu.matmul %199, %200, %cst_72 {dimension_numbers = #tpu.dot_dimension_numbers<[1], [0], [0], [1], [0, 0, 1, 1], [], []>} : vector<8x32xbf16>, vector<32x32xbf16>, vector<8x32xf32> -> vector<8x32xf32>
    %c0_73 = arith.constant 0 : index
    %c0_74 = arith.constant 0 : index
    %202 = vector.load %arg14[%c0_73, %c0_74] : memref<1x32xf32, #tpu.memory_space<vmem>>, vector<1x32xf32>
    %203 = vector.broadcast %202 : vector<1x32xf32> to vector<8x32xf32>
    %204 = arith.addf %201, %203 : vector<8x32xf32>
    %205 = arith.addf %121, %204 : vector<8x32xf32>
    %cst_75 = arith.constant dense<0.000000e+00> : vector<8xf32>
    %206 = vector.multi_reduction <add>, %205, %cst_75 [1] : vector<8x32xf32> to vector<8xf32>
    %207 = vector.shape_cast %206 : vector<8xf32> to vector<8x1xf32>
    %cst_76 = arith.constant 3.200000e+01 : f32
    %208 = vector.broadcast %cst_76 : f32 to vector<8x1xf32>
    %209 = arith.divf %207, %208 : vector<8x1xf32>
    %210 = vector.broadcast %209 : vector<8x1xf32> to vector<8x32xf32>
    %211 = arith.subf %205, %210 : vector<8x32xf32>
    %212 = arith.mulf %211, %211 : vector<8x32xf32>
    %cst_77 = arith.constant dense<0.000000e+00> : vector<8xf32>
    %213 = vector.multi_reduction <add>, %212, %cst_77 [1] : vector<8x32xf32> to vector<8xf32>
    %214 = vector.shape_cast %213 : vector<8xf32> to vector<8x1xf32>
    %cst_78 = arith.constant 3.200000e+01 : f32
    %215 = vector.broadcast %cst_78 : f32 to vector<8x1xf32>
    %216 = arith.divf %214, %215 : vector<8x1xf32>
    %217 = vector.broadcast %209 : vector<8x1xf32> to vector<8x32xf32>
    %218 = arith.subf %205, %217 : vector<8x32xf32>
    %cst_79 = arith.constant 9.99999974E-6 : f32
    %219 = vector.broadcast %cst_79 : f32 to vector<8x1xf32>
    %220 = arith.addf %216, %219 : vector<8x1xf32>
    %221 = math.rsqrt %220 : vector<8x1xf32>
    %222 = vector.broadcast %221 : vector<8x1xf32> to vector<8x32xf32>
    %223 = arith.mulf %218, %222 : vector<8x32xf32>
    %c0_80 = arith.constant 0 : index
    %c0_81 = arith.constant 0 : index
    %224 = vector.load %arg15[%c0_80, %c0_81] : memref<1x32xf32, #tpu.memory_space<vmem>>, vector<1x32xf32>
    %225 = vector.broadcast %224 : vector<1x32xf32> to vector<8x32xf32>
    %226 = arith.mulf %223, %225 : vector<8x32xf32>
    %c0_82 = arith.constant 0 : index
    %c0_83 = arith.constant 0 : index
    %227 = vector.load %arg16[%c0_82, %c0_83] : memref<1x32xf32, #tpu.memory_space<vmem>>, vector<1x32xf32>
    %228 = vector.broadcast %227 : vector<1x32xf32> to vector<8x32xf32>
    %229 = arith.addf %226, %228 : vector<8x32xf32>
    %230 = arith.truncf %229 : vector<8x32xf32> to vector<8x32xbf16>
    %c0_84 = arith.constant 0 : index
    %c0_85 = arith.constant 0 : index
    %231 = vector.load %arg17[%c0_84, %c0_85] : memref<32x64xbf16, #tpu.memory_space<vmem>>, vector<32x64xbf16>
    %cst_86 = arith.constant dense<0.000000e+00> : vector<8x64xf32>
    %232 = tpu.matmul %230, %231, %cst_86 {dimension_numbers = #tpu.dot_dimension_numbers<[1], [0], [0], [1], [0, 0, 1, 1], [], []>} : vector<8x32xbf16>, vector<32x64xbf16>, vector<8x64xf32> -> vector<8x64xf32>
    %c0_87 = arith.constant 0 : index
    %c0_88 = arith.constant 0 : index
    %233 = vector.load %arg18[%c0_87, %c0_88] : memref<1x64xf32, #tpu.memory_space<vmem>>, vector<1x64xf32>
    %234 = vector.broadcast %233 : vector<1x64xf32> to vector<8x64xf32>
    %235 = arith.addf %232, %234 : vector<8x64xf32>
    %cst_89 = arith.constant 0.000000e+00 : f32
    %236 = vector.broadcast %cst_89 : f32 to vector<8x64xf32>
    %237 = arith.maximumf %235, %236 : vector<8x64xf32>
    %238 = arith.truncf %237 : vector<8x64xf32> to vector<8x64xbf16>
    %c0_90 = arith.constant 0 : index
    %c0_91 = arith.constant 0 : index
    %239 = vector.load %arg19[%c0_90, %c0_91] : memref<64x32xbf16, #tpu.memory_space<vmem>>, vector<64x32xbf16>
    %cst_92 = arith.constant dense<0.000000e+00> : vector<8x32xf32>
    %240 = tpu.matmul %238, %239, %cst_92 {dimension_numbers = #tpu.dot_dimension_numbers<[1], [0], [0], [1], [0, 0, 1, 1], [], []>} : vector<8x64xbf16>, vector<64x32xbf16>, vector<8x32xf32> -> vector<8x32xf32>
    %c0_93 = arith.constant 0 : index
    %c0_94 = arith.constant 0 : index
    %241 = vector.load %arg20[%c0_93, %c0_94] : memref<1x32xf32, #tpu.memory_space<vmem>>, vector<1x32xf32>
    %242 = vector.broadcast %241 : vector<1x32xf32> to vector<8x32xf32>
    %243 = arith.addf %240, %242 : vector<8x32xf32>
    %244 = arith.addf %229, %243 : vector<8x32xf32>
    %cst_95 = arith.constant dense<0.000000e+00> : vector<8xf32>
    %245 = vector.multi_reduction <add>, %244, %cst_95 [1] : vector<8x32xf32> to vector<8xf32>
    %246 = vector.shape_cast %245 : vector<8xf32> to vector<8x1xf32>
    %cst_96 = arith.constant 3.200000e+01 : f32
    %247 = vector.broadcast %cst_96 : f32 to vector<8x1xf32>
    %248 = arith.divf %246, %247 : vector<8x1xf32>
    %249 = vector.broadcast %248 : vector<8x1xf32> to vector<8x32xf32>
    %250 = arith.subf %244, %249 : vector<8x32xf32>
    %251 = arith.mulf %250, %250 : vector<8x32xf32>
    %cst_97 = arith.constant dense<0.000000e+00> : vector<8xf32>
    %252 = vector.multi_reduction <add>, %251, %cst_97 [1] : vector<8x32xf32> to vector<8xf32>
    %253 = vector.shape_cast %252 : vector<8xf32> to vector<8x1xf32>
    %cst_98 = arith.constant 3.200000e+01 : f32
    %254 = vector.broadcast %cst_98 : f32 to vector<8x1xf32>
    %255 = arith.divf %253, %254 : vector<8x1xf32>
    %256 = vector.broadcast %248 : vector<8x1xf32> to vector<8x32xf32>
    %257 = arith.subf %244, %256 : vector<8x32xf32>
    %cst_99 = arith.constant 9.99999974E-6 : f32
    %258 = vector.broadcast %cst_99 : f32 to vector<8x1xf32>
    %259 = arith.addf %255, %258 : vector<8x1xf32>
    %260 = math.rsqrt %259 : vector<8x1xf32>
    %261 = vector.broadcast %260 : vector<8x1xf32> to vector<8x32xf32>
    %262 = arith.mulf %257, %261 : vector<8x32xf32>
    %c0_100 = arith.constant 0 : index
    %c0_101 = arith.constant 0 : index
    %263 = vector.load %arg21[%c0_100, %c0_101] : memref<1x32xf32, #tpu.memory_space<vmem>>, vector<1x32xf32>
    %264 = vector.broadcast %263 : vector<1x32xf32> to vector<8x32xf32>
    %265 = arith.mulf %262, %264 : vector<8x32xf32>
    %c0_102 = arith.constant 0 : index
    %c0_103 = arith.constant 0 : index
    %266 = vector.load %arg22[%c0_102, %c0_103] : memref<1x32xf32, #tpu.memory_space<vmem>>, vector<1x32xf32>
    %267 = vector.broadcast %266 : vector<1x32xf32> to vector<8x32xf32>
    %268 = arith.addf %265, %267 : vector<8x32xf32>
    %269 = vector.shape_cast %268 : vector<8x32xf32> to vector<1x8x32xf32>
    %c0_104 = arith.constant 0 : index
    %c0_105 = arith.constant 0 : index
    %c0_106 = arith.constant 0 : index
    %270 = vector.load %arg23[%c0_104, %c0_105, %c0_106] : memref<1x8x32xf32, #tpu.memory_space<vmem>>, vector<1x8x32xf32>
    tpu.vector_store %arg23[%c0_104, %c0_105, %c0_106], %269 {strides = array<i32>} : memref<1x8x32xf32, #tpu.memory_space<vmem>>, vector<1x8x32xf32>,
    return
  }
  func.func @transform_0(%arg0: i32) -> (i32, i32, i32) {
    %c0_i32 = arith.constant 0 : i32
    %c0_i32_0 = arith.constant 0 : i32
    %c0_i32_1 = arith.constant 0 : i32
    return %arg0, %c0_i32, %c0_i32_0 : i32, i32, i32
  }
  func.func @transform_1(%arg0: i32) -> (i32, i32, i32) {
    %c0_i32 = arith.constant 0 : i32
    %c0_i32_0 = arith.constant 0 : i32
    %c0_i32_1 = arith.constant 0 : i32
    return %arg0, %c0_i32, %c0_i32_0 : i32, i32, i32
  }
  func.func @transform_2(%arg0: i32) -> (i32, i32) {
    %c0_i32 = arith.constant 0 : i32
    %c0_i32_0 = arith.constant 0 : i32
    %c0_i32_1 = arith.constant 0 : i32
    return %c0_i32, %c0_i32_0 : i32, i32
  }
  func.func @transform_3(%arg0: i32) -> (i32, i32) {
    %c0_i32 = arith.constant 0 : i32
    %c0_i32_0 = arith.constant 0 : i32
    %c0_i32_1 = arith.constant 0 : i32
    return %c0_i32, %c0_i32_0 : i32, i32
  }
  func.func @transform_4(%arg0: i32) -> (i32, i32) {
    %c0_i32 = arith.constant 0 : i32
    %c0_i32_0 = arith.constant 0 : i32
    %c0_i32_1 = arith.constant 0 : i32
    return %c0_i32, %c0_i32_0 : i32, i32
  }
  func.func @transform_5(%arg0: i32) -> (i32, i32) {
    %c0_i32 = arith.constant 0 : i32
    %c0_i32_0 = arith.constant 0 : i32
    %c0_i32_1 = arith.constant 0 : i32
    return %c0_i32, %c0_i32_0 : i32, i32
  }
  func.func @transform_6(%arg0: i32) -> (i32, i32) {
    %c0_i32 = arith.constant 0 : i32
    %c0_i32_0 = arith.constant 0 : i32
    %c0_i32_1 = arith.constant 0 : i32
    return %c0_i32, %c0_i32_0 : i32, i32
  }
  func.func @transform_7(%arg0: i32) -> (i32, i32) {
    %c0_i32 = arith.constant 0 : i32
    %c0_i32_0 = arith.constant 0 : i32
    %c0_i32_1 = arith.constant 0 : i32
    return %c0_i32, %c0_i32_0 : i32, i32
  }
  func.func @transform_8(%arg0: i32) -> (i32, i32) {
    %c0_i32 = arith.constant 0 : i32
    %c0_i32_0 = arith.constant 0 : i32
    %c0_i32_1 = arith.constant 0 : i32
    return %c0_i32, %c0_i32_0 : i32, i32
  }
  func.func @transform_9(%arg0: i32) -> (i32, i32) {
    %c0_i32 = arith.constant 0 : i32
    %c0_i32_0 = arith.constant 0 : i32
    %c0_i32_1 = arith.constant 0 : i32
    return %c0_i32, %c0_i32_0 : i32, i32
  }
  func.func @transform_10(%arg0: i32) -> (i32, i32) {
    %c0_i32 = arith.constant 0 : i32
    %c0_i32_0 = arith.constant 0 : i32
    %c0_i32_1 = arith.constant 0 : i32
    return %c0_i32, %c0_i32_0 : i32, i32
  }
  func.func @transform_11(%arg0: i32) -> (i32, i32) {
    %c0_i32 = arith.constant 0 : i32
    %c0_i32_0 = arith.constant 0 : i32
    %c0_i32_1 = arith.constant 0 : i32
    return %c0_i32, %c0_i32_0 : i32, i32
  }
  func.func @transform_12(%arg0: i32) -> (i32, i32) {
    %c0_i32 = arith.constant 0 : i32
    %c0_i32_0 = arith.constant 0 : i32
    %c0_i32_1 = arith.constant 0 : i32
    return %c0_i32, %c0_i32_0 : i32, i32
  }
  func.func @transform_13(%arg0: i32) -> (i32, i32) {
    %c0_i32 = arith.constant 0 : i32
    %c0_i32_0 = arith.constant 0 : i32
    %c0_i32_1 = arith.constant 0 : i32
    return %c0_i32, %c0_i32_0 : i32, i32
  }
  func.func @transform_14(%arg0: i32) -> (i32, i32) {
    %c0_i32 = arith.constant 0 : i32
    %c0_i32_0 = arith.constant 0 : i32
    %c0_i32_1 = arith.constant 0 : i32
    return %c0_i32, %c0_i32_0 : i32, i32
  }
  func.func @transform_15(%arg0: i32) -> (i32, i32) {
    %c0_i32 = arith.constant 0 : i32
    %c0_i32_0 = arith.constant 0 : i32
    %c0_i32_1 = arith.constant 0 : i32
    return %c0_i32, %c0_i32_0 : i32, i32
  }
  func.func @transform_16(%arg0: i32) -> (i32, i32) {
    %c0_i32 = arith.constant 0 : i32
    %c0_i32_0 = arith.constant 0 : i32
    %c0_i32_1 = arith.constant 0 : i32
    return %c0_i32, %c0_i32_0 : i32, i32
  }
  func.func @transform_17(%arg0: i32) -> (i32, i32) {
    %c0_i32 = arith.constant 0 : i32
    %c0_i32_0 = arith.constant 0 : i32
    %c0_i32_1 = arith.constant 0 : i32
    return %c0_i32, %c0_i32_0 : i32, i32
  }
  func.func @transform_18(%arg0: i32) -> (i32, i32) {
    %c0_i32 = arith.constant 0 : i32
    %c0_i32_0 = arith.constant 0 : i32
    %c0_i32_1 = arith.constant 0 : i32
    return %c0_i32, %c0_i32_0 : i32, i32
  }
  func.func @transform_19(%arg0: i32) -> (i32, i32) {
    %c0_i32 = arith.constant 0 : i32
    %c0_i32_0 = arith.constant 0 : i32
    %c0_i32_1 = arith.constant 0 : i32
    return %c0_i32, %c0_i32_0 : i32, i32
  }
  func.func @transform_20(%arg0: i32) -> (i32, i32) {
    %c0_i32 = arith.constant 0 : i32
    %c0_i32_0 = arith.constant 0 : i32
    %c0_i32_1 = arith.constant 0 : i32
    return %c0_i32, %c0_i32_0 : i32, i32
  }
  func.func @transform_21(%arg0: i32) -> (i32, i32) {
    %c0_i32 = arith.constant 0 : i32
    %c0_i32_0 = arith.constant 0 : i32
    %c0_i32_1 = arith.constant 0 : i32
    return %c0_i32, %c0_i32_0 : i32, i32
  }
  func.func @transform_22(%arg0: i32) -> (i32, i32, i32) {
    %c0_i32 = arith.constant 0 : i32
    %c0_i32_0 = arith.constant 0 : i32
    %c0_i32_1 = arith.constant 0 : i32
    return %arg0, %c0_i32, %c0_i32_0 : i32, i32, i32
  }
}

</mosaic_0001>

<llo_original>
// kernel: decoder_layer_forward.1
$region0: #{decoder_layer_forward.1}
  #allocation0 [shape = 'u32[]', space=smem, size = 0x4, offset = 0x4, fixed_abs, tag = 'smem constant byte address 0x4 - core index']
  #allocation1 [shape = 'u32[144,128]{1,0:T(1,128)}', space=vmem, size = 0x12000, scoped, tag = 'internal scratch']
  %s0 = inlined_call_operand.vmem [shape: f32[2,8,32], index: 0, kind: input, shape index: {}]
  %s1 = inlined_call_operand.vmem [shape: f32[2,16,32], index: 1, kind: input, shape index: {}]
  %s2 = inlined_call_operand.vmem [shape: bf16[32,32], index: 2, kind: input, shape index: {}]
  %s3 = inlined_call_operand.vmem [shape: bf16[32,32], index: 3, kind: input, shape index: {}]
  %s4 = inlined_call_operand.vmem [shape: bf16[32,32], index: 4, kind: input, shape index: {}]
  %s5 = inlined_call_operand.vmem [shape: bf16[32,32], index: 5, kind: input, shape index: {}]
  %s6 = inlined_call_operand.vmem [shape: f32[1,32], index: 6, kind: input, shape index: {}]
  %s7 = inlined_call_operand.vmem [shape: f32[1,32], index: 7, kind: input, shape index: {}]
  %s8 = inlined_call_operand.vmem [shape: f32[1,32], index: 8, kind: input, shape index: {}]
  %s9 = inlined_call_operand.vmem [shape: bf16[32,32], index: 9, kind: input, shape index: {}]
  %s10 = inlined_call_operand.vmem [shape: bf16[32,32], index: 10, kind: input, shape index: {}]
  %s11 = inlined_call_operand.vmem [shape: bf16[32,32], index: 11, kind: input, shape index: {}]
  %s12 = inlined_call_operand.vmem [shape: bf16[32,32], index: 12, kind: input, shape index: {}]
  %s13 = inlined_call_operand.vmem [shape: f32[1,32], index: 13, kind: input, shape index: {}]
  %s14 = inlined_call_operand.vmem [shape: f32[1,32], index: 14, kind: input, shape index: {}]
  %s15 = inlined_call_operand.vmem [shape: f32[1,32], index: 15, kind: input, shape index: {}]
  %s16 = inlined_call_operand.vmem [shape: bf16[32,64], index: 16, kind: input, shape index: {}]
  %s17 = inlined_call_operand.vmem [shape: f32[1,64], index: 17, kind: input, shape index: {}]
  %s18 = inlined_call_operand.vmem [shape: bf16[64,32], index: 18, kind: input, shape index: {}]
  %s19 = inlined_call_operand.vmem [shape: f32[1,32], index: 19, kind: input, shape index: {}]
  %s20 = inlined_call_operand.vmem [shape: f32[1,32], index: 20, kind: input, shape index: {}]
  %s21 = inlined_call_operand.vmem [shape: f32[1,32], index: 21, kind: input, shape index: {}]
  %s22 = inlined_call_operand.hbm [shape: f32[2,8,32], index: 22, kind: output, shape index: {}]
  %s23 = sld [smem:[#allocation0]]
  $region121: #{decoder_layer_forward.1} parent=0
    _
  %s25 = ssub.s32 1, %s23
  %s26 = scalar_select 0, %s25, %s23
  $region1: #{decoder_layer_forward.1} parent=0
    #allocation2 [shape = 'u8[8192]{0}', space=vmem, size = 0x2000, scoped, tag = 'output window, operand 0']
    #allocation3 [shape = 's32[2]{0}', space=sflag, size = 0x8, scoped, tag = 'scoped memory for decoder_layer_forward.1']
    %27 = vsyncpa [#allocation3], 0
    %s28 = scalar_lea.sflag [#allocation3], 1
    %29 = vsyncpa %s28, 0
    loop: start=0, step=1, limit=4
    $region2: #{decoder_layer_forward.1} parent=1 // loop_pre_header
      _
    $region3: #{decoder_layer_forward.1} parent=1 // loop_header
      %s31 = sphi 0, %s35
      %p32 = scmp.ge.s32.totalorder %s31, 4
      %s41 = sphi 0, %s43
      %s44 = sphi 0, %s41
      %s45 = sphi 0, %s44
      %s61 = sphi 0, %s45
      %s67 = sphi 0, %s69
      %s70 = sphi 0, %s67
      %s71 = sphi 0, %s70
      %s87 = sphi 0, %s71
      %s91 = sphi 0, %s91
      %s93 = sphi 0, %s91
      %s94 = sphi 0, %s93
      %s108 = sphi 0, %s94
      %s112 = sphi 0, %s112
      %s114 = sphi 0, %s112
      %s115 = sphi 0, %s114
      %s129 = sphi 0, %s115
      %s133 = sphi 0, %s133
      %s135 = sphi 0, %s133
      %s136 = sphi 0, %s135
      %s150 = sphi 0, %s136
      %s154 = sphi 0, %s154
      %s156 = sphi 0, %s154
      %s157 = sphi 0, %s156
      %s171 = sphi 0, %s157
      %s175 = sphi 0, %s175
      %s177 = sphi 0, %s175
      %s178 = sphi 0, %s177
      %s192 = sphi 0, %s178
      %s196 = sphi 0, %s196
      %s198 = sphi 0, %s196
      %s199 = sphi 0, %s198
      %s213 = sphi 0, %s199
      %s217 = sphi 0, %s217
      %s219 = sphi 0, %s217
      %s220 = sphi 0, %s219
      %s234 = sphi 0, %s220
      %s238 = sphi 0, %s238
      %s240 = sphi 0, %s238
      %s241 = sphi 0, %s240
      %s255 = sphi 0, %s241
      %s259 = sphi 0, %s259
      %s261 = sphi 0, %s259
      %s262 = sphi 0, %s261
      %s276 = sphi 0, %s262
      %s280 = sphi 0, %s280
      %s282 = sphi 0, %s280
      %s283 = sphi 0, %s282
      %s297 = sphi 0, %s283
      %s301 = sphi 0, %s301
      %s303 = sphi 0, %s301
      %s304 = sphi 0, %s303
      %s318 = sphi 0, %s304
      %s322 = sphi 0, %s322
      %s324 = sphi 0, %s322
      %s325 = sphi 0, %s324
      %s339 = sphi 0, %s325
      %s343 = sphi 0, %s343
      %s345 = sphi 0, %s343
      %s346 = sphi 0, %s345
      %s360 = sphi 0, %s346
      %s364 = sphi 0, %s364
      %s366 = sphi 0, %s364
      %s367 = sphi 0, %s366
      %s381 = sphi 0, %s367
      %s385 = sphi 0, %s385
      %s387 = sphi 0, %s385
      %s388 = sphi 0, %s387
      %s402 = sphi 0, %s388
      %s406 = sphi 0, %s406
      %s408 = sphi 0, %s406
      %s409 = sphi 0, %s408
      %s423 = sphi 0, %s409
      %s427 = sphi 0, %s427
      %s429 = sphi 0, %s427
      %s430 = sphi 0, %s429
      %s444 = sphi 0, %s430
      %s448 = sphi 0, %s448
      %s450 = sphi 0, %s448
      %s451 = sphi 0, %s450
      %s465 = sphi 0, %s451
      %s469 = sphi 0, %s469
      %s471 = sphi 0, %s469
      %s472 = sphi 0, %s471
      %s486 = sphi 0, %s472
      %s490 = sphi 0, %s490
      %s492 = sphi 0, %s490
      %s493 = sphi 0, %s492
      %s507 = sphi 0, %s493
      %s513 = sphi 0, %s515
      %s516 = sphi 0, %s513
      %s517 = sphi 0, %s516
      %s533 = sphi 0, %s517
    $region4: #{decoder_layer_forward.1} parent=1 // loop_header_branch
      %34 = sbr.rel (%p32) target = $region8
    $region5: #{decoder_layer_forward.1} parent=1 // loop_body
      %s36 = ssub.s32 %s31, 1
      %s37 = ssub.s32 %s31, 2
      %s38 = sadd.s32 %s31, 1
      %s39 = ssub.s32 %s31, %s38
      %p40 = scmp.eq.s32.totalorder %s39, 0
      %s42 = sadd.s32 %s41, 1
      %s43 = scalar_select %p40, %s41, %s42
      %p46 = pneg %p40
      %p47 = scmp.eq.s32.totalorder %s31, 1
      %p48 = por %p46, %p47
      %p49 = scmp.ne.s32.totalorder %s41, %s44
      %p50 = scmp.eq.s32.totalorder %s31, 0
      %p51 = por %p49, %p50
      %p52 = scmp.ne.s32.totalorder %s41, %s44
      %p53 = scmp.eq.s32.totalorder %s36, 1
      %p54 = por %p52, %p53
      %p55 = scmp.ne.s32.totalorder %s44, %s45
      %p56 = scmp.eq.s32.totalorder %s36, 0
      %p57 = por %p55, %p56
      %p58 = scmp.ne.s32.totalorder %s44, %s45
      %p59 = scmp.eq.s32.totalorder %s37, 1
      %p60 = por %p58, %p59
      %p62 = scmp.ne.s32.totalorder %s45, %s61
      %p63 = scmp.eq.s32.totalorder %s37, 0
      %p64 = por %p62, %p63
      %s65 = ssub.s32 %s31, %s38
      %p66 = scmp.eq.s32.totalorder %s65, 0
      %s68 = sadd.s32 %s67, 1
      %s69 = scalar_select %p66, %s67, %s68
      %p72 = pneg %p66
      %p73 = scmp.eq.s32.totalorder %s31, 1
      %p74 = por %p72, %p73
      %p75 = scmp.ne.s32.totalorder %s67, %s70
      %p76 = scmp.eq.s32.totalorder %s31, 0
      %p77 = por %p75, %p76
      %p78 = scmp.ne.s32.totalorder %s67, %s70
      %p79 = scmp.eq.s32.totalorder %s36, 1
      %p80 = por %p78, %p79
      %p81 = scmp.ne.s32.totalorder %s70, %s71
      %p82 = scmp.eq.s32.totalorder %s36, 0
      %p83 = por %p81, %p82
      %p84 = scmp.ne.s32.totalorder %s70, %s71
      %p85 = scmp.eq.s32.totalorder %s37, 1
      %p86 = por %p84, %p85
      %p88 = scmp.ne.s32.totalorder %s71, %s87
      %p89 = scmp.eq.s32.totalorder %s37, 0
      %p90 = por %p88, %p89
      %s92 = sadd.s32 %s91, 1
      %p95 = scmp.eq.s32.totalorder %s31, 1
      %p96 = scmp.ne.s32.totalorder %s91, %s93
      %p97 = scmp.eq.s32.totalorder %s31, 0
      %p98 = por %p96, %p97
      %p99 = scmp.ne.s32.totalorder %s91, %s93
      %p100 = scmp.eq.s32.totalorder %s36, 1
      %p101 = por %p99, %p100
      %p102 = scmp.ne.s32.totalorder %s93, %s94
      %p103 = scmp.eq.s32.totalorder %s36, 0
      %p104 = por %p102, %p103
      %p105 = scmp.ne.s32.totalorder %s93, %s94
      %p106 = scmp.eq.s32.totalorder %s37, 1
      %p107 = por %p105, %p106
      %p109 = scmp.ne.s32.totalorder %s94, %s108
      %p110 = scmp.eq.s32.totalorder %s37, 0
      %p111 = por %p109, %p110
      %s113 = sadd.s32 %s112, 1
      %p116 = scmp.eq.s32.totalorder %s31, 1
      %p117 = scmp.ne.s32.totalorder %s112, %s114
      %p118 = scmp.eq.s32.totalorder %s31, 0
      %p119 = por %p117, %p118
      %p120 = scmp.ne.s32.totalorder %s112, %s114
      %p121 = scmp.eq.s32.totalorder %s36, 1
      %p122 = por %p120, %p121
      %p123 = scmp.ne.s32.totalorder %s114, %s115
      %p124 = scmp.eq.s32.totalorder %s36, 0
      %p125 = por %p123, %p124
      %p126 = scmp.ne.s32.totalorder %s114, %s115
      %p127 = scmp.eq.s32.totalorder %s37, 1
      %p128 = por %p126, %p127
      %p130 = scmp.ne.s32.totalorder %s115, %s129
      %p131 = scmp.eq.s32.totalorder %s37, 0
      %p132 = por %p130, %p131
      %s134 = sadd.s32 %s133, 1
      %p137 = scmp.eq.s32.totalorder %s31, 1
      %p138 = scmp.ne.s32.totalorder %s133, %s135
      %p139 = scmp.eq.s32.totalorder %s31, 0
      %p140 = por %p138, %p139
      %p141 = scmp.ne.s32.totalorder %s133, %s135
      %p142 = scmp.eq.s32.totalorder %s36, 1
      %p143 = por %p141, %p142
      %p144 = scmp.ne.s32.totalorder %s135, %s136
      %p145 = scmp.eq.s32.totalorder %s36, 0
      %p146 = por %p144, %p145
      %p147 = scmp.ne.s32.totalorder %s135, %s136
      %p148 = scmp.eq.s32.totalorder %s37, 1
      %p149 = por %p147, %p148
      %p151 = scmp.ne.s32.totalorder %s136, %s150
      %p152 = scmp.eq.s32.totalorder %s37, 0
      %p153 = por %p151, %p152
      %s155 = sadd.s32 %s154, 1
      %p158 = scmp.eq.s32.totalorder %s31, 1
      %p159 = scmp.ne.s32.totalorder %s154, %s156
      %p160 = scmp.eq.s32.totalorder %s31, 0
      %p161 = por %p159, %p160
      %p162 = scmp.ne.s32.totalorder %s154, %s156
      %p163 = scmp.eq.s32.totalorder %s36, 1
      %p164 = por %p162, %p163
      %p165 = scmp.ne.s32.totalorder %s156, %s157
      %p166 = scmp.eq.s32.totalorder %s36, 0
      %p167 = por %p165, %p166
      %p168 = scmp.ne.s32.totalorder %s156, %s157
      %p169 = scmp.eq.s32.totalorder %s37, 1
      %p170 = por %p168, %p169
      %p172 = scmp.ne.s32.totalorder %s157, %s171
      %p173 = scmp.eq.s32.totalorder %s37, 0
      %p174 = por %p172, %p173
      %s176 = sadd.s32 %s175, 1
      %p179 = scmp.eq.s32.totalorder %s31, 1
      %p180 = scmp.ne.s32.totalorder %s175, %s177
      %p181 = scmp.eq.s32.totalorder %s31, 0
      %p182 = por %p180, %p181
      %p183 = scmp.ne.s32.totalorder %s175, %s177
      %p184 = scmp.eq.s32.totalorder %s36, 1
      %p185 = por %p183, %p184
      %p186 = scmp.ne.s32.totalorder %s177, %s178
      %p187 = scmp.eq.s32.totalorder %s36, 0
      %p188 = por %p186, %p187
      %p189 = scmp.ne.s32.totalorder %s177, %s178
      %p190 = scmp.eq.s32.totalorder %s37, 1
      %p191 = por %p189, %p190
      %p193 = scmp.ne.s32.totalorder %s178, %s192
      %p194 = scmp.eq.s32.totalorder %s37, 0
      %p195 = por %p193, %p194
      %s197 = sadd.s32 %s196, 1
      %p200 = scmp.eq.s32.totalorder %s31, 1
      %p201 = scmp.ne.s32.totalorder %s196, %s198
      %p202 = scmp.eq.s32.totalorder %s31, 0
      %p203 = por %p201, %p202
      %p204 = scmp.ne.s32.totalorder %s196, %s198
      %p205 = scmp.eq.s32.totalorder %s36, 1
      %p206 = por %p204, %p205
      %p207 = scmp.ne.s32.totalorder %s198, %s199
      %p208 = scmp.eq.s32.totalorder %s36, 0
      %p209 = por %p207, %p208
      %p210 = scmp.ne.s32.totalorder %s198, %s199
      %p211 = scmp.eq.s32.totalorder %s37, 1
      %p212 = por %p210, %p211
      %p214 = scmp.ne.s32.totalorder %s199, %s213
      %p215 = scmp.eq.s32.totalorder %s37, 0
      %p216 = por %p214, %p215
      %s218 = sadd.s32 %s217, 1
      %p221 = scmp.eq.s32.totalorder %s31, 1
      %p222 = scmp.ne.s32.totalorder %s217, %s219
      %p223 = scmp.eq.s32.totalorder %s31, 0
      %p224 = por %p222, %p223
      %p225 = scmp.ne.s32.totalorder %s217, %s219
      %p226 = scmp.eq.s32.totalorder %s36, 1
      %p227 = por %p225, %p226
      %p228 = scmp.ne.s32.totalorder %s219, %s220
      %p229 = scmp.eq.s32.totalorder %s36, 0
      %p230 = por %p228, %p229
      %p231 = scmp.ne.s32.totalorder %s219, %s220
      %p232 = scmp.eq.s32.totalorder %s37, 1
      %p233 = por %p231, %p232
      %p235 = scmp.ne.s32.totalorder %s220, %s234
      %p236 = scmp.eq.s32.totalorder %s37, 0
      %p237 = por %p235, %p236
      %s239 = sadd.s32 %s238, 1
      %p242 = scmp.eq.s32.totalorder %s31, 1
      %p243 = scmp.ne.s32.totalorder %s238, %s240
      %p244 = scmp.eq.s32.totalorder %s31, 0
      %p245 = por %p243, %p244
      %p246 = scmp.ne.s32.totalorder %s238, %s240
      %p247 = scmp.eq.s32.totalorder %s36, 1
      %p248 = por %p246, %p247
      %p249 = scmp.ne.s32.totalorder %s240, %s241
      %p250 = scmp.eq.s32.totalorder %s36, 0
      %p251 = por %p249, %p250
      %p252 = scmp.ne.s32.totalorder %s240, %s241
      %p253 = scmp.eq.s32.totalorder %s37, 1
      %p254 = por %p252, %p253
      %p256 = scmp.ne.s32.totalorder %s241, %s255
      %p257 = scmp.eq.s32.totalorder %s37, 0
      %p258 = por %p256, %p257
      %s260 = sadd.s32 %s259, 1
      %p263 = scmp.eq.s32.totalorder %s31, 1
      %p264 = scmp.ne.s32.totalorder %s259, %s261
      %p265 = scmp.eq.s32.totalorder %s31, 0
      %p266 = por %p264, %p265
      %p267 = scmp.ne.s32.totalorder %s259, %s261
      %p268 = scmp.eq.s32.totalorder %s36, 1
      %p269 = por %p267, %p268
      %p270 = scmp.ne.s32.totalorder %s261, %s262
      %p271 = scmp.eq.s32.totalorder %s36, 0
      %p272 = por %p270, %p271
      %p273 = scmp.ne.s32.totalorder %s261, %s262
      %p274 = scmp.eq.s32.totalorder %s37, 1
      %p275 = por %p273, %p274
      %p277 = scmp.ne.s32.totalorder %s262, %s276
      %p278 = scmp.eq.s32.totalorder %s37, 0
      %p279 = por %p277, %p278
      %s281 = sadd.s32 %s280, 1
      %p284 = scmp.eq.s32.totalorder %s31, 1
      %p285 = scmp.ne.s32.totalorder %s280, %s282
      %p286 = scmp.eq.s32.totalorder %s31, 0
      %p287 = por %p285, %p286
      %p288 = scmp.ne.s32.totalorder %s280, %s282
      %p289 = scmp.eq.s32.totalorder %s36, 1
      %p290 = por %p288, %p289
      %p291 = scmp.ne.s32.totalorder %s282, %s283
      %p292 = scmp.eq.s32.totalorder %s36, 0
      %p293 = por %p291, %p292
      %p294 = scmp.ne.s32.totalorder %s282, %s283
      %p295 = scmp.eq.s32.totalorder %s37, 1
      %p296 = por %p294, %p295
      %p298 = scmp.ne.s32.totalorder %s283, %s297
      %p299 = scmp.eq.s32.totalorder %s37, 0
      %p300 = por %p298, %p299
      %s302 = sadd.s32 %s301, 1
      %p305 = scmp.eq.s32.totalorder %s31, 1
      %p306 = scmp.ne.s32.totalorder %s301, %s303
      %p307 = scmp.eq.s32.totalorder %s31, 0
      %p308 = por %p306, %p307
      %p309 = scmp.ne.s32.totalorder %s301, %s303
      %p310 = scmp.eq.s32.totalorder %s36, 1
      %p311 = por %p309, %p310
      %p312 = scmp.ne.s32.totalorder %s303, %s304
      %p313 = scmp.eq.s32.totalorder %s36, 0
      %p314 = por %p312, %p313
      %p315 = scmp.ne.s32.totalorder %s303, %s304
      %p316 = scmp.eq.s32.totalorder %s37, 1
      %p317 = por %p315, %p316
      %p319 = scmp.ne.s32.totalorder %s304, %s318
      %p320 = scmp.eq.s32.totalorder %s37, 0
      %p321 = por %p319, %p320
      %s323 = sadd.s32 %s322, 1
      %p326 = scmp.eq.s32.totalorder %s31, 1
      %p327 = scmp.ne.s32.totalorder %s322, %s324
      %p328 = scmp.eq.s32.totalorder %s31, 0
      %p329 = por %p327, %p328
      %p330 = scmp.ne.s32.totalorder %s322, %s324
      %p331 = scmp.eq.s32.totalorder %s36, 1
      %p332 = por %p330, %p331
      %p333 = scmp.ne.s32.totalorder %s324, %s325
      %p334 = scmp.eq.s32.totalorder %s36, 0
      %p335 = por %p333, %p334
      %p336 = scmp.ne.s32.totalorder %s324, %s325
      %p337 = scmp.eq.s32.totalorder %s37, 1
      %p338 = por %p336, %p337
      %p340 = scmp.ne.s32.totalorder %s325, %s339
      %p341 = scmp.eq.s32.totalorder %s37, 0
      %p342 = por %p340, %p341
      %s344 = sadd.s32 %s343, 1
      %p347 = scmp.eq.s32.totalorder %s31, 1
      %p348 = scmp.ne.s32.totalorder %s343, %s345
      %p349 = scmp.eq.s32.totalorder %s31, 0
      %p350 = por %p348, %p349
      %p351 = scmp.ne.s32.totalorder %s343, %s345
      %p352 = scmp.eq.s32.totalorder %s36, 1
      %p353 = por %p351, %p352
      %p354 = scmp.ne.s32.totalorder %s345, %s346
      %p355 = scmp.eq.s32.totalorder %s36, 0
      %p356 = por %p354, %p355
      %p357 = scmp.ne.s32.totalorder %s345, %s346
      %p358 = scmp.eq.s32.totalorder %s37, 1
      %p359 = por %p357, %p358
      %p361 = scmp.ne.s32.totalorder %s346, %s360
      %p362 = scmp.eq.s32.totalorder %s37, 0
      %p363 = por %p361, %p362
      %s365 = sadd.s32 %s364, 1
      %p368 = scmp.eq.s32.totalorder %s31, 1
      %p369 = scmp.ne.s32.totalorder %s364, %s366
      %p370 = scmp.eq.s32.totalorder %s31, 0
      %p371 = por %p369, %p370
      %p372 = scmp.ne.s32.totalorder %s364, %s366
      %p373 = scmp.eq.s32.totalorder %s36, 1
      %p374 = por %p372, %p373
      %p375 = scmp.ne.s32.totalorder %s366, %s367
      %p376 = scmp.eq.s32.totalorder %s36, 0
      %p377 = por %p375, %p376
      %p378 = scmp.ne.s32.totalorder %s366, %s367
      %p379 = scmp.eq.s32.totalorder %s37, 1
      %p380 = por %p378, %p379
      %p382 = scmp.ne.s32.totalorder %s367, %s381
      %p383 = scmp.eq.s32.totalorder %s37, 0
      %p384 = por %p382, %p383
      %s386 = sadd.s32 %s385, 1
      %p389 = scmp.eq.s32.totalorder %s31, 1
      %p390 = scmp.ne.s32.totalorder %s385, %s387
      %p391 = scmp.eq.s32.totalorder %s31, 0
      %p392 = por %p390, %p391
      %p393 = scmp.ne.s32.totalorder %s385, %s387
      %p394 = scmp.eq.s32.totalorder %s36, 1
      %p395 = por %p393, %p394
      %p396 = scmp.ne.s32.totalorder %s387, %s388
      %p397 = scmp.eq.s32.totalorder %s36, 0
      %p398 = por %p396, %p397
      %p399 = scmp.ne.s32.totalorder %s387, %s388
      %p400 = scmp.eq.s32.totalorder %s37, 1
      %p401 = por %p399, %p400
      %p403 = scmp.ne.s32.totalorder %s388, %s402
      %p404 = scmp.eq.s32.totalorder %s37, 0
      %p405 = por %p403, %p404
      %s407 = sadd.s32 %s406, 1
      %p410 = scmp.eq.s32.totalorder %s31, 1
      %p411 = scmp.ne.s32.totalorder %s406, %s408
      %p412 = scmp.eq.s32.totalorder %s31, 0
      %p413 = por %p411, %p412
      %p414 = scmp.ne.s32.totalorder %s406, %s408
      %p415 = scmp.eq.s32.totalorder %s36, 1
      %p416 = por %p414, %p415
      %p417 = scmp.ne.s32.totalorder %s408, %s409
      %p418 = scmp.eq.s32.totalorder %s36, 0
      %p419 = por %p417, %p418
      %p420 = scmp.ne.s32.totalorder %s408, %s409
      %p421 = scmp.eq.s32.totalorder %s37, 1
      %p422 = por %p420, %p421
      %p424 = scmp.ne.s32.totalorder %s409, %s423
      %p425 = scmp.eq.s32.totalorder %s37, 0
      %p426 = por %p424, %p425
      %s428 = sadd.s32 %s427, 1
      %p431 = scmp.eq.s32.totalorder %s31, 1
      %p432 = scmp.ne.s32.totalorder %s427, %s429
      %p433 = scmp.eq.s32.totalorder %s31, 0
      %p434 = por %p432, %p433
      %p435 = scmp.ne.s32.totalorder %s427, %s429
      %p436 = scmp.eq.s32.totalorder %s36, 1
      %p437 = por %p435, %p436
      %p438 = scmp.ne.s32.totalorder %s429, %s430
      %p439 = scmp.eq.s32.totalorder %s36, 0
      %p440 = por %p438, %p439
      %p441 = scmp.ne.s32.totalorder %s429, %s430
      %p442 = scmp.eq.s32.totalorder %s37, 1
      %p443 = por %p441, %p442
      %p445 = scmp.ne.s32.totalorder %s430, %s444
      %p446 = scmp.eq.s32.totalorder %s37, 0
      %p447 = por %p445, %p446
      %s449 = sadd.s32 %s448, 1
      %p452 = scmp.eq.s32.totalorder %s31, 1
      %p453 = scmp.ne.s32.totalorder %s448, %s450
      %p454 = scmp.eq.s32.totalorder %s31, 0
      %p455 = por %p453, %p454
      %p456 = scmp.ne.s32.totalorder %s448, %s450
      %p457 = scmp.eq.s32.totalorder %s36, 1
      %p458 = por %p456, %p457
      %p459 = scmp.ne.s32.totalorder %s450, %s451
      %p460 = scmp.eq.s32.totalorder %s36, 0
      %p461 = por %p459, %p460
      %p462 = scmp.ne.s32.totalorder %s450, %s451
      %p463 = scmp.eq.s32.totalorder %s37, 1
      %p464 = por %p462, %p463
      %p466 = scmp.ne.s32.totalorder %s451, %s465
      %p467 = scmp.eq.s32.totalorder %s37, 0
      %p468 = por %p466, %p467
      %s470 = sadd.s32 %s469, 1
      %p473 = scmp.eq.s32.totalorder %s31, 1
      %p474 = scmp.ne.s32.totalorder %s469, %s471
      %p475 = scmp.eq.s32.totalorder %s31, 0
      %p476 = por %p474, %p475
      %p477 = scmp.ne.s32.totalorder %s469, %s471
      %p478 = scmp.eq.s32.totalorder %s36, 1
      %p479 = por %p477, %p478
      %p480 = scmp.ne.s32.totalorder %s471, %s472
      %p481 = scmp.eq.s32.totalorder %s36, 0
      %p482 = por %p480, %p481
      %p483 = scmp.ne.s32.totalorder %s471, %s472
      %p484 = scmp.eq.s32.totalorder %s37, 1
      %p485 = por %p483, %p484
      %p487 = scmp.ne.s32.totalorder %s472, %s486
      %p488 = scmp.eq.s32.totalorder %s37, 0
      %p489 = por %p487, %p488
      %s491 = sadd.s32 %s490, 1
      %p494 = scmp.eq.s32.totalorder %s31, 1
      %p495 = scmp.ne.s32.totalorder %s490, %s492
      %p496 = scmp.eq.s32.totalorder %s31, 0
      %p497 = por %p495, %p496
      %p498 = scmp.ne.s32.totalorder %s490, %s492
      %p499 = scmp.eq.s32.totalorder %s36, 1
      %p500 = por %p498, %p499
      %p501 = scmp.ne.s32.totalorder %s492, %s493
      %p502 = scmp.eq.s32.totalorder %s36, 0
      %p503 = por %p501, %p502
      %p504 = scmp.ne.s32.totalorder %s492, %s493
      %p505 = scmp.eq.s32.totalorder %s37, 1
      %p506 = por %p504, %p505
      %p508 = scmp.ne.s32.totalorder %s493, %s507
      %p509 = scmp.eq.s32.totalorder %s37, 0
      %p510 = por %p508, %p509
      %s511 = ssub.s32 %s31, %s38
      %p512 = scmp.eq.s32.totalorder %s511, 0
      %s514 = sadd.s32 %s513, 1
      %s515 = scalar_select %p512, %s513, %s514
      %p518 = pneg %p512
      %p519 = scmp.eq.s32.totalorder %s31, 1
      %p520 = por %p518, %p519
      %p521 = scmp.ne.s32.totalorder %s513, %s516
      %p522 = scmp.eq.s32.totalorder %s31, 0
      %p523 = por %p521, %p522
      %p524 = scmp.ne.s32.totalorder %s513, %s516
      %p525 = scmp.eq.s32.totalorder %s36, 1
      %p526 = por %p524, %p525
      %p527 = scmp.ne.s32.totalorder %s516, %s517
      %p528 = scmp.eq.s32.totalorder %s36, 0
      %p529 = por %p527, %p528
      %p530 = scmp.ne.s32.totalorder %s516, %s517
      %p531 = scmp.eq.s32.totalorder %s37, 1
      %p532 = por %p530, %p531
      %p534 = scmp.ne.s32.totalorder %s517, %s533
      %p535 = scmp.eq.s32.totalorder %s37, 0
      %p536 = por %p534, %p535
      %p537 = scmp.le.s32.totalorder 1, %s31
      %p538 = scmp.lt.s32.totalorder %s31, 3
      %p539 = pnand %p537, %p538
      %p540 = pneg %p539
      // Predicated region
      $region9: #{decoder_layer_forward.1} parent=5 // pred_check
        _
      $region10: #{decoder_layer_forward.1} parent=5 // pred_check_branch
        %542 = sbr.rel (%p539) target = $region12
      $region11: #{decoder_layer_forward.1} parent=5 // pred_region
        %s543 = ssub.s32 %s31, 1
        // Predicated region
        $region13: #{decoder_layer_forward.1} parent=11 // pred_check
          %p544 = pneg %p104
        $region14: #{decoder_layer_forward.1} parent=11 // pred_check_branch
          %546 = sbr.rel (%p544) target = $region16
        $region15: #{decoder_layer_forward.1} parent=11 // pred_region
          _
        $region16: #{decoder_layer_forward.1} parent=11 // pred_fallthru
          _
        // Predicated region
        $region17: #{decoder_layer_forward.1} parent=11 // pred_check
          %p547 = pneg %p125
        $region18: #{decoder_layer_forward.1} parent=11 // pred_check_branch
          %549 = sbr.rel (%p547) target = $region20
        $region19: #{decoder_layer_forward.1} parent=11 // pred_region
          _
        $region20: #{decoder_layer_forward.1} parent=11 // pred_fallthru
          _
        // Predicated region
        $region21: #{decoder_layer_forward.1} parent=11 // pred_check
          %p550 = pneg %p146
        $region22: #{decoder_layer_forward.1} parent=11 // pred_check_branch
          %552 = sbr.rel (%p550) target = $region24
        $region23: #{decoder_layer_forward.1} parent=11 // pred_region
          _
        $region24: #{decoder_layer_forward.1} parent=11 // pred_fallthru
          _
        // Predicated region
        $region25: #{decoder_layer_forward.1} parent=11 // pred_check
          %p553 = pneg %p167
        $region26: #{decoder_layer_forward.1} parent=11 // pred_check_branch
          %555 = sbr.rel (%p553) target = $region28
        $region27: #{decoder_layer_forward.1} parent=11 // pred_region
          _
        $region28: #{decoder_layer_forward.1} parent=11 // pred_fallthru
          _
        // Predicated region
        $region29: #{decoder_layer_forward.1} parent=11 // pred_check
          %p556 = pneg %p188
        $region30: #{decoder_layer_forward.1} parent=11 // pred_check_branch
          %558 = sbr.rel (%p556) target = $region32
        $region31: #{decoder_layer_forward.1} parent=11 // pred_region
          _
        $region32: #{decoder_layer_forward.1} parent=11 // pred_fallthru
          _
        // Predicated region
        $region33: #{decoder_layer_forward.1} parent=11 // pred_check
          %p559 = pneg %p209
        $region34: #{decoder_layer_forward.1} parent=11 // pred_check_branch
          %561 = sbr.rel (%p559) target = $region36
        $region35: #{decoder_layer_forward.1} parent=11 // pred_region
          _
        $region36: #{decoder_layer_forward.1} parent=11 // pred_fallthru
          _
        // Predicated region
        $region37: #{decoder_layer_forward.1} parent=11 // pred_check
          %p562 = pneg %p230
        $region38: #{decoder_layer_forward.1} parent=11 // pred_check_branch
          %564 = sbr.rel (%p562) target = $region40
        $region39: #{decoder_layer_forward.1} parent=11 // pred_region
          _
        $region40: #{decoder_layer_forward.1} parent=11 // pred_fallthru
          _
        // Predicated region
        $region41: #{decoder_layer_forward.1} parent=11 // pred_check
          %p565 = pneg %p251
        $region42: #{decoder_layer_forward.1} parent=11 // pred_check_branch
          %567 = sbr.rel (%p565) target = $region44
        $region43: #{decoder_layer_forward.1} parent=11 // pred_region
          _
        $region44: #{decoder_layer_forward.1} parent=11 // pred_fallthru
          _
        // Predicated region
        $region45: #{decoder_layer_forward.1} parent=11 // pred_check
          %p568 = pneg %p272
        $region46: #{decoder_layer_forward.1} parent=11 // pred_check_branch
          %570 = sbr.rel (%p568) target = $region48
        $region47: #{decoder_layer_forward.1} parent=11 // pred_region
          _
        $region48: #{decoder_layer_forward.1} parent=11 // pred_fallthru
          _
        // Predicated region
        $region49: #{decoder_layer_forward.1} parent=11 // pred_check
          %p571 = pneg %p293
        $region50: #{decoder_layer_forward.1} parent=11 // pred_check_branch
          %573 = sbr.rel (%p571) target = $region52
        $region51: #{decoder_layer_forward.1} parent=11 // pred_region
          _
        $region52: #{decoder_layer_forward.1} parent=11 // pred_fallthru
          _
        // Predicated region
        $region53: #{decoder_layer_forward.1} parent=11 // pred_check
          %p574 = pneg %p314
        $region54: #{decoder_layer_forward.1} parent=11 // pred_check_branch
          %576 = sbr.rel (%p574) target = $region56
        $region55: #{decoder_layer_forward.1} parent=11 // pred_region
          _
        $region56: #{decoder_layer_forward.1} parent=11 // pred_fallthru
          _
        // Predicated region
        $region57: #{decoder_layer_forward.1} parent=11 // pred_check
          %p577 = pneg %p335
        $region58: #{decoder_layer_forward.1} parent=11 // pred_check_branch
          %579 = sbr.rel (%p577) target = $region60
        $region59: #{decoder_layer_forward.1} parent=11 // pred_region
          _
        $region60: #{decoder_layer_forward.1} parent=11 // pred_fallthru
          _
        // Predicated region
        $region61: #{decoder_layer_forward.1} parent=11 // pred_check
          %p580 = pneg %p356
        $region62: #{decoder_layer_forward.1} parent=11 // pred_check_branch
          %582 = sbr.rel (%p580) target = $region64
        $region63: #{decoder_layer_forward.1} parent=11 // pred_region
          _
        $region64: #{decoder_layer_forward.1} parent=11 // pred_fallthru
          _
        // Predicated region
        $region65: #{decoder_layer_forward.1} parent=11 // pred_check
          %p583 = pneg %p377
        $region66: #{decoder_layer_forward.1} parent=11 // pred_check_branch
          %585 = sbr.rel (%p583) target = $region68
        $region67: #{decoder_layer_forward.1} parent=11 // pred_region
          _
        $region68: #{decoder_layer_forward.1} parent=11 // pred_fallthru
          _
        // Predicated region
        $region69: #{decoder_layer_forward.1} parent=11 // pred_check
          %p586 = pneg %p398
        $region70: #{decoder_layer_forward.1} parent=11 // pred_check_branch
          %588 = sbr.rel (%p586) target = $region72
        $region71: #{decoder_layer_forward.1} parent=11 // pred_region
          _
        $region72: #{decoder_layer_forward.1} parent=11 // pred_fallthru
          _
        // Predicated region
        $region73: #{decoder_layer_forward.1} parent=11 // pred_check
          %p589 = pneg %p419
        $region74: #{decoder_layer_forward.1} parent=11 // pred_check_branch
          %591 = sbr.rel (%p589) target = $region76
        $region75: #{decoder_layer_forward.1} parent=11 // pred_region
          _
        $region76: #{decoder_layer_forward.1} parent=11 // pred_fallthru
          _
        // Predicated region
        $region77: #{decoder_layer_forward.1} parent=11 // pred_check
          %p592 = pneg %p440
        $region78: #{decoder_layer_forward.1} parent=11 // pred_check_branch
          %594 = sbr.rel (%p592) target = $region80
        $region79: #{decoder_layer_forward.1} parent=11 // pred_region
          _
        $region80: #{decoder_layer_forward.1} parent=11 // pred_fallthru
          _
        // Predicated region
        $region81: #{decoder_layer_forward.1} parent=11 // pred_check
          %p595 = pneg %p461
        $region82: #{decoder_layer_forward.1} parent=11 // pred_check_branch
          %597 = sbr.rel (%p595) target = $region84
        $region83: #{decoder_layer_forward.1} parent=11 // pred_region
          _
        $region84: #{decoder_layer_forward.1} parent=11 // pred_fallthru
          _
        // Predicated region
        $region85: #{decoder_layer_forward.1} parent=11 // pred_check
          %p598 = pneg %p482
        $region86: #{decoder_layer_forward.1} parent=11 // pred_check_branch
          %600 = sbr.rel (%p598) target = $region88
        $region87: #{decoder_layer_forward.1} parent=11 // pred_region
          _
        $region88: #{decoder_layer_forward.1} parent=11 // pred_fallthru
          _
        // Predicated region
        $region89: #{decoder_layer_forward.1} parent=11 // pred_check
          %p601 = pneg %p503
        $region90: #{decoder_layer_forward.1} parent=11 // pred_check_branch
          %603 = sbr.rel (%p601) target = $region92
        $region91: #{decoder_layer_forward.1} parent=11 // pred_region
          _
        $region92: #{decoder_layer_forward.1} parent=11 // pred_fallthru
          _
      $region12: #{decoder_layer_forward.1} parent=5 // pred_fallthru
        _
      %p604 = scmp.lt.s32.totalorder %s31, 2
      // Predicated region
      $region93: #{decoder_layer_forward.1} parent=5 // pred_check
        %p605 = pneg %p604
      $region94: #{decoder_layer_forward.1} parent=5 // pred_check_branch
        %607 = sbr.rel (%p605) target = $region96
      $region95: #{decoder_layer_forward.1} parent=5 // pred_region
        // Predicated region
        $region97: #{decoder_layer_forward.1} parent=95 // pred_check
          %p608 = pneg %p51
        $region98: #{decoder_layer_forward.1} parent=95 // pred_check_branch
          %610 = sbr.rel (%p608) target = $region100
        $region99: #{decoder_layer_forward.1} parent=95 // pred_region
          %p611 = scmp.lt.s32.totalorder %s31, 1
          %s612 = scalar_select %p611, %s31, 1
          %s613 = smul.addr %s612, 8
          %s614 = scalar_lea.vmem %s0, %s613
        $region100: #{decoder_layer_forward.1} parent=95 // pred_fallthru
          _
        // Predicated region
        $region101: #{decoder_layer_forward.1} parent=95 // pred_check
          %p615 = pneg %p77
        $region102: #{decoder_layer_forward.1} parent=95 // pred_check_branch
          %617 = sbr.rel (%p615) target = $region104
        $region103: #{decoder_layer_forward.1} parent=95 // pred_region
          %p618 = scmp.lt.s32.totalorder %s31, 1
          %s619 = scalar_select %p618, %s31, 1
          %s620 = smul.addr %s619, 2
          %s621 = smul.addr %s620, 8
          %s622 = scalar_lea.vmem %s1, %s621
        $region104: #{decoder_layer_forward.1} parent=95 // pred_fallthru
          _
      $region96: #{decoder_layer_forward.1} parent=5 // pred_fallthru
        _
      %p623 = scmp.le.s32.totalorder 1, %s31
      %p624 = scmp.lt.s32.totalorder %s31, 3
      %p625 = pnand %p623, %p624
      %p626 = pneg %p625
      // Predicated region
      $region105: #{decoder_layer_forward.1} parent=5 // pred_check
        _
      $region106: #{decoder_layer_forward.1} parent=5 // pred_check_branch
        %628 = sbr.rel (%p625) target = $region108
      $region107: #{decoder_layer_forward.1} parent=5 // pred_region
        %s629 = ssub.s32 %s31, 1
        %p630 = scmp.lt.s32.totalorder %s36, 1
        %s631 = scalar_select %p630, %s36, 1
        %s632 = smul.addr %s631, 8
        %s633 = scalar_lea.vmem %s0, %s632
        %p634 = pneg %p57
        %p635 = pneg %p54
        %p636 = scmp.lt.s32.totalorder %s36, 1
        %s637 = scalar_select %p636, %s36, 1
        %s638 = smul.addr %s637, 2
        %s639 = smul.addr %s638, 8
        %s640 = scalar_lea.vmem %s1, %s639
        %p641 = pneg %p83
        %p642 = pneg %p80
        %p643 = pneg %p104
        %p644 = pneg %p101
        %p645 = pneg %p125
        %p646 = pneg %p122
        %p647 = pneg %p146
        %p648 = pneg %p143
        %p649 = pneg %p167
        %p650 = pneg %p164
        %p651 = pneg %p188
        %p652 = pneg %p185
        %p653 = pneg %p209
        %p654 = pneg %p206
        %p655 = pneg %p230
        %p656 = pneg %p227
        %p657 = pneg %p251
        %p658 = pneg %p248
        %p659 = pneg %p272
        %p660 = pneg %p269
        %p661 = pneg %p293
        %p662 = pneg %p290
        %p663 = pneg %p314
        %p664 = pneg %p311
        %p665 = pneg %p335
        %p666 = pneg %p332
        %p667 = pneg %p356
        %p668 = pneg %p353
        %p669 = pneg %p377
        %p670 = pneg %p374
        %p671 = pneg %p398
        %p672 = pneg %p395
        %p673 = pneg %p419
        %p674 = pneg %p416
        %p675 = pneg %p440
        %p676 = pneg %p437
        %p677 = pneg %p461
        %p678 = pneg %p458
        %p679 = pneg %p482
        %p680 = pneg %p479
        %p681 = pneg %p503
        %p682 = pneg %p500
        %p683 = pneg %p529
        %p684 = pneg %p526
        %s685 = sand.u32 %s516, 1
        %s686 = scalar_lea.sflag [#allocation3], %s685
        %s687 = sand.u32 %s516, 1
        %s688 = smul.addr %s687, 8
        %s689 = scalar_lea.vmem [#allocation2], %s688
        %p690 = scmp.lt.s32.totalorder %s36, 1
        %s691 = scalar_select %p690, %s36, 1
        %s692 = smul.addr %s691, 8
        %s693 = scalar_lea.vmem %s0, %s692
        %p694 = scmp.lt.s32.totalorder %s36, 1
        %s695 = scalar_select %p694, %s36, 1
        %s696 = smul.addr %s695, 2
        %s697 = smul.addr %s696, 8
        %s698 = scalar_lea.vmem %s1, %s697
        %v700 = vld [vmem:[%s693] sm:$0xff]
        %v701 = vld [vmem:[%s698] sm:$0xff]
        %v702 = vld [vmem:[%s698 + $0x8] sm:$0xff]
        %v703 = vpack.c.bf16 %v700, %v700
        %v704 = vld [vmem:[%s2] sm:$0xf]
        %v705 = vld [vmem:[%s2 + $0x4] sm:$0xf]
        %v706 = vld [vmem:[%s2 + $0x8] sm:$0xf]
        %v707 = vld [vmem:[%s2 + $0xc] sm:$0xf]
        %v712 = vunpack.c.l.b16 %v704
        %v713 = vunpack.c.l.b16 %v705
        %v714 = vunpack.c.l.b16 %v706
        %v715 = vunpack.c.l.b16 %v707
        %v716 = vpack.c.b16 %v713, %v712
        %v717 = vpack.c.b16 %v715, %v714
        %vm720 = vcmask 261120
        %v722 = vsel %vm720, %v703, 0
        %724 = vmatprep.subr.bf16.mxu0 0
        %725 = vmatpush1.bf16.msra.mxu0 0
        %726 = vmatprep.subr.bf16.mxu0 0
        %727 = vmatpush1.bf16.msra.mxu0 0
        %728 = vmatprep.subr.bf16.mxu0 0
        %729 = vmatpush1.bf16.msra.mxu0 0
        %730 = vmatprep.subr.bf16.mxu0 0
        %731 = vmatpush1.bf16.msra.mxu0 0
        %732 = vmatprep.subr.bf16.mxu0 0
        %733 = vmatpush1.bf16.msra.mxu0 0
        %734 = vmatprep.subr.bf16.mxu0 0
        %735 = vmatpush1.bf16.msra.mxu0 0
        %736 = vmatprep.subr.bf16.mxu0 0
        %737 = vmatpush1.bf16.msra.mxu0 %v717
        %738 = vmatprep.subr.bf16.mxu0 0
        %739 = vmatpush1.bf16.msra.mxu0 %v716
        %740 = vmatprep.subr.bf16.mxu0 0
        %741 = vmatpush2.bf16.msra.mxu0 0
        %742 = vmatprep.subr.bf16.mxu0 0
        %743 = vmatpush2.bf16.msra.mxu0 0
        %744 = vmatprep.subr.bf16.mxu0 0
        %745 = vmatpush2.bf16.msra.mxu0 0
        %746 = vmatprep.subr.bf16.mxu0 0
        %747 = vmatpush2.bf16.msra.mxu0 0
        %748 = vmatprep.subr.bf16.mxu0 0
        %749 = vmatpush2.bf16.msra.mxu0 0
        %750 = vmatprep.subr.bf16.mxu0 0
        %751 = vmatpush2.bf16.msra.mxu0 0
        %752 = vmatprep.subr.bf16.mxu0 0
        %753 = vmatpush2.bf16.msra.mxu0 0
        %754 = vmatprep.subr.bf16.mxu0 0
        %755 = vmatpush2.bf16.msra.mxu0 0
        %756 = vmatprep.mubr.bf16.mxu0 0
        %757 = vmatmul.mubr.bf16.gmra.mxu0 %v722
        %v758 = vpop.f32.mrf.mxu0
        %v759 = vadd.f32 0.0, %v758
        %v760 = vpop.f32.mrf.mxu0
        %v761 = vpop.f32.mrf.mxu0
        %v762 = vpop.f32.mrf.mxu0
        %763 = vdwg.mxu0
        %v764 = vld [vmem:[%s3] sm:$0xf]
        %v765 = vld [vmem:[%s3 + $0x4] sm:$0xf]
        %v766 = vld [vmem:[%s3 + $0x8] sm:$0xf]
        %v767 = vld [vmem:[%s3 + $0xc] sm:$0xf]
        %v772 = vunpack.c.l.b16 %v764
        %v773 = vunpack.c.l.b16 %v765
        %v774 = vunpack.c.l.b16 %v766
        %v775 = vunpack.c.l.b16 %v767
        %v776 = vpack.c.b16 %v773, %v772
        %v777 = vpack.c.b16 %v775, %v774
        %780 = vmatprep.subr.bf16.mxu0 0
        %781 = vmatpush1.bf16.msra.mxu0 0
        %782 = vmatprep.subr.bf16.mxu0 0
        %783 = vmatpush1.bf16.msra.mxu0 0
        %784 = vmatprep.subr.bf16.mxu0 0
        %785 = vmatpush1.bf16.msra.mxu0 0
        %786 = vmatprep.subr.bf16.mxu0 0
        %787 = vmatpush1.bf16.msra.mxu0 0
        %788 = vmatprep.subr.bf16.mxu0 0
        %789 = vmatpush1.bf16.msra.mxu0 0
        %790 = vmatprep.subr.bf16.mxu0 0
        %791 = vmatpush1.bf16.msra.mxu0 0
        %792 = vmatprep.subr.bf16.mxu0 0
        %793 = vmatpush1.bf16.msra.mxu0 %v777
        %794 = vmatprep.subr.bf16.mxu0 0
        %795 = vmatpush1.bf16.msra.mxu0 %v776
        %796 = vmatprep.subr.bf16.mxu0 0
        %797 = vmatpush2.bf16.msra.mxu0 0
        %798 = vmatprep.subr.bf16.mxu0 0
        %799 = vmatpush2.bf16.msra.mxu0 0
        %800 = vmatprep.subr.bf16.mxu0 0
        %801 = vmatpush2.bf16.msra.mxu0 0
        %802 = vmatprep.subr.bf16.mxu0 0
        %803 = vmatpush2.bf16.msra.mxu0 0
        %804 = vmatprep.subr.bf16.mxu0 0
        %805 = vmatpush2.bf16.msra.mxu0 0
        %806 = vmatprep.subr.bf16.mxu0 0
        %807 = vmatpush2.bf16.msra.mxu0 0
        %808 = vmatprep.subr.bf16.mxu0 0
        %809 = vmatpush2.bf16.msra.mxu0 0
        %810 = vmatprep.subr.bf16.mxu0 0
        %811 = vmatpush2.bf16.msra.mxu0 0
        %812 = vmatprep.mubr.bf16.mxu0 0
        %813 = vmatmul.mubr.bf16.gmra.mxu0 %v722
        %v814 = vpop.f32.mrf.mxu0
        %v815 = vadd.f32 0.0, %v814
        %v816 = vpop.f32.mrf.mxu0
        %v817 = vpop.f32.mrf.mxu0
        %v818 = vpop.f32.mrf.mxu0
        %819 = vdwg.mxu0
        %v820 = vld [vmem:[%s4] sm:$0xf]
        %v821 = vld [vmem:[%s4 + $0x4] sm:$0xf]
        %v822 = vld [vmem:[%s4 + $0x8] sm:$0xf]
        %v823 = vld [vmem:[%s4 + $0xc] sm:$0xf]
        %v828 = vunpack.c.l.b16 %v820
        %v829 = vunpack.c.l.b16 %v821
        %v830 = vunpack.c.l.b16 %v822
        %v831 = vunpack.c.l.b16 %v823
        %v832 = vpack.c.b16 %v829, %v828
        %v833 = vpack.c.b16 %v831, %v830
        %836 = vmatprep.subr.bf16.mxu0 0
        %837 = vmatpush1.bf16.msra.mxu0 0
        %838 = vmatprep.subr.bf16.mxu0 0
        %839 = vmatpush1.bf16.msra.mxu0 0
        %840 = vmatprep.subr.bf16.mxu0 0
        %841 = vmatpush1.bf16.msra.mxu0 0
        %842 = vmatprep.subr.bf16.mxu0 0
        %843 = vmatpush1.bf16.msra.mxu0 0
        %844 = vmatprep.subr.bf16.mxu0 0
        %845 = vmatpush1.bf16.msra.mxu0 0
        %846 = vmatprep.subr.bf16.mxu0 0
        %847 = vmatpush1.bf16.msra.mxu0 0
        %848 = vmatprep.subr.bf16.mxu0 0
        %849 = vmatpush1.bf16.msra.mxu0 %v833
        %850 = vmatprep.subr.bf16.mxu0 0
        %851 = vmatpush1.bf16.msra.mxu0 %v832
        %852 = vmatprep.subr.bf16.mxu0 0
        %853 = vmatpush2.bf16.msra.mxu0 0
        %854 = vmatprep.subr.bf16.mxu0 0
        %855 = vmatpush2.bf16.msra.mxu0 0
        %856 = vmatprep.subr.bf16.mxu0 0
        %857 = vmatpush2.bf16.msra.mxu0 0
        %858 = vmatprep.subr.bf16.mxu0 0
        %859 = vmatpush2.bf16.msra.mxu0 0
        %860 = vmatprep.subr.bf16.mxu0 0
        %861 = vmatpush2.bf16.msra.mxu0 0
        %862 = vmatprep.subr.bf16.mxu0 0
        %863 = vmatpush2.bf16.msra.mxu0 0
        %864 = vmatprep.subr.bf16.mxu0 0
        %865 = vmatpush2.bf16.msra.mxu0 0
        %866 = vmatprep.subr.bf16.mxu0 0
        %867 = vmatpush2.bf16.msra.mxu0 0
        %868 = vmatprep.mubr.bf16.mxu0 0
        %869 = vmatmul.mubr.bf16.gmra.mxu0 %v722
        %v870 = vpop.f32.mrf.mxu0
        %v871 = vadd.f32 0.0, %v870
        %v872 = vpop.f32.mrf.mxu0
        %v873 = vpop.f32.mrf.mxu0
        %v874 = vpop.f32.mrf.mxu0
        %875 = vdwg.mxu0
        %v876 = vpack.c.bf16 %v759, %v759
        %v877 = vpack.c.bf16 %v815, %v815
        %v878 = vpack.c.bf16 %v871, %v871
        %v879 = vlaneseq
        %v880 = vshrl.u32 %v879, 7
        %v881 = vlaneseq
        %v882 = vand.u32 %v881, 127
        %vm883 = vcmp.gt.s32.totalorder %v882, %v880
        %v884 = vsel %vm883, -1e+30, 0.0
        %vm885 = vcmask 64512
        %v887 = vsel %vm885, %v876, 0
        %v890 = vsel %vm885, %v877, 0
        %892 = vmatprep.subr.bf16.mxu0 0
        %893 = vmatpush1.bf16.xpose.msra.mxu0 0
        %894 = vmatprep.subr.bf16.mxu0 0
        %895 = vmatpush1.bf16.xpose.msra.mxu0 0
        %896 = vmatprep.subr.bf16.mxu0 0
        %897 = vmatpush1.bf16.xpose.msra.mxu0 0
        %898 = vmatprep.subr.bf16.mxu0 0
        %899 = vmatpush1.bf16.xpose.msra.mxu0 0
        %900 = vmatprep.subr.bf16.mxu0 0
        %901 = vmatpush1.bf16.xpose.msra.mxu0 0
        %902 = vmatprep.subr.bf16.mxu0 0
        %903 = vmatpush1.bf16.xpose.msra.mxu0 0
        %904 = vmatprep.subr.bf16.mxu0 0
        %905 = vmatpush1.bf16.xpose.msra.mxu0 0
        %906 = vmatprep.subr.bf16.mxu0 0
        %907 = vmatpush1.bf16.xpose.msra.mxu0 %v890
        %908 = vmatprep.subr.bf16.mxu0 0
        %909 = vmatpush2.bf16.xpose.msra.mxu0 0
        %910 = vmatprep.subr.bf16.mxu0 0
        %911 = vmatpush2.bf16.xpose.msra.mxu0 0
        %912 = vmatprep.subr.bf16.mxu0 0
        %913 = vmatpush2.bf16.xpose.msra.mxu0 0
        %914 = vmatprep.subr.bf16.mxu0 0
        %915 = vmatpush2.bf16.xpose.msra.mxu0 0
        %916 = vmatprep.subr.bf16.mxu0 0
        %917 = vmatpush2.bf16.xpose.msra.mxu0 0
        %918 = vmatprep.subr.bf16.mxu0 0
        %919 = vmatpush2.bf16.xpose.msra.mxu0 0
        %920 = vmatprep.subr.bf16.mxu0 0
        %921 = vmatpush2.bf16.xpose.msra.mxu0 0
        %922 = vmatprep.subr.bf16.mxu0 0
        %923 = vmatpush2.bf16.xpose.msra.mxu0 0
        %924 = vmatprep.mubr.bf16.mxu0 0
        %925 = vmatmul.mubr.bf16.gmra.mxu0 %v887
        %v926 = vpop.f32.mrf.mxu0
        %v927 = vadd.f32 %v884, %v926
        %v928 = vpop.f32.mrf.mxu0
        %v929 = vpop.f32.mrf.mxu0
        %v930 = vpop.f32.mrf.mxu0
        %931 = vdwg.mxu0
        %v932 = vsel %vm885, %v927, -inf
        %933 = vmax.xlane.f32.xlu0 %v932
        %v934 = vpop.xlane.xlu0 %933
        %v935 = vsub.f32 %v927, %v934
        %v936 = vmul.f32 %v935, 1.442695
        %v937 = vpow.pop %v936
        %v938 = vsel %vm885, %v937, 0.0
        %939 = vadd.xlane.f32.xlu0 %v938
        %v940 = vpop.xlane.xlu0 %939
        %v941 = vrcp.pop %v940
        %v942 = vmul.f32 %v937, %v941
        %v943 = vpack.c.bf16 %v942, %v942
        %v945 = vsel %vm885, %v943, 0
        %vm947 = vcmask 1043456
        %v949 = vsel %vm947, %v878, 0
        %951 = vmatprep.subr.bf16.mxu0 0
        %952 = vmatpush1.bf16.msra.mxu0 0
        %953 = vmatprep.subr.bf16.mxu0 0
        %954 = vmatpush1.bf16.msra.mxu0 0
        %955 = vmatprep.subr.bf16.mxu0 0
        %956 = vmatpush1.bf16.msra.mxu0 0
        %957 = vmatprep.subr.bf16.mxu0 0
        %958 = vmatpush1.bf16.msra.mxu0 0
        %959 = vmatprep.subr.bf16.mxu0 0
        %960 = vmatpush1.bf16.msra.mxu0 0
        %961 = vmatprep.subr.bf16.mxu0 0
        %962 = vmatpush1.bf16.msra.mxu0 0
        %963 = vmatprep.subr.bf16.mxu0 0
        %964 = vmatpush1.bf16.msra.mxu0 0
        %965 = vmatprep.subr.bf16.mxu0 0
        %966 = vmatpush1.bf16.msra.mxu0 %v949
        %967 = vmatprep.subr.bf16.mxu0 0
        %968 = vmatpush2.bf16.msra.mxu0 0
        %969 = vmatprep.subr.bf16.mxu0 0
        %970 = vmatpush2.bf16.msra.mxu0 0
        %971 = vmatprep.subr.bf16.mxu0 0
        %972 = vmatpush2.bf16.msra.mxu0 0
        %973 = vmatprep.subr.bf16.mxu0 0
        %974 = vmatpush2.bf16.msra.mxu0 0
        %975 = vmatprep.subr.bf16.mxu0 0
        %976 = vmatpush2.bf16.msra.mxu0 0
        %977 = vmatprep.subr.bf16.mxu0 0
        %978 = vmatpush2.bf16.msra.mxu0 0
        %979 = vmatprep.subr.bf16.mxu0 0
        %980 = vmatpush2.bf16.msra.mxu0 0
        %981 = vmatprep.subr.bf16.mxu0 0
        %982 = vmatpush2.bf16.msra.mxu0 0
        %983 = vmatprep.mubr.bf16.mxu0 0
        %984 = vmatmul.mubr.bf16.gmra.mxu0 %v945
        %v985 = vpop.f32.mrf.mxu0
        %v986 = vadd.f32 0.0, %v985
        %v987 = vpop.f32.mrf.mxu0
        %v988 = vpop.f32.mrf.mxu0
        %v989 = vpop.f32.mrf.mxu0
        %990 = vdwg.mxu0
        %992 = vrot.lane.b32.xlu0 %v876, 120
        %v993 = vpop.permute.xlu0 %992
        %995 = vrot.lane.b32.xlu0 %v877, 120
        %v996 = vpop.permute.xlu0 %995
        %v998 = vsel %vm885, %v993, 0
        %v1001 = vsel %vm885, %v996, 0
        %1003 = vmatprep.subr.bf16.mxu0 0
        %1004 = vmatpush1.bf16.xpose.msra.mxu0 0
        %1005 = vmatprep.subr.bf16.mxu0 0
        %1006 = vmatpush1.bf16.xpose.msra.mxu0 0
        %1007 = vmatprep.subr.bf16.mxu0 0
        %1008 = vmatpush1.bf16.xpose.msra.mxu0 0
        %1009 = vmatprep.subr.bf16.mxu0 0
        %1010 = vmatpush1.bf16.xpose.msra.mxu0 0
        %1011 = vmatprep.subr.bf16.mxu0 0
        %1012 = vmatpush1.bf16.xpose.msra.mxu0 0
        %1013 = vmatprep.subr.bf16.mxu0 0
        %1014 = vmatpush1.bf16.xpose.msra.mxu0 0
        %1015 = vmatprep.subr.bf16.mxu0 0
        %1016 = vmatpush1.bf16.xpose.msra.mxu0 0
        %1017 = vmatprep.subr.bf16.mxu0 0
        %1018 = vmatpush1.bf16.xpose.msra.mxu0 %v1001
        %1019 = vmatprep.subr.bf16.mxu0 0
        %1020 = vmatpush2.bf16.xpose.msra.mxu0 0
        %1021 = vmatprep.subr.bf16.mxu0 0
        %1022 = vmatpush2.bf16.xpose.msra.mxu0 0
        %1023 = vmatprep.subr.bf16.mxu0 0
        %1024 = vmatpush2.bf16.xpose.msra.mxu0 0
        %1025 = vmatprep.subr.bf16.mxu0 0
        %1026 = vmatpush2.bf16.xpose.msra.mxu0 0
        %1027 = vmatprep.subr.bf16.mxu0 0
        %1028 = vmatpush2.bf16.xpose.msra.mxu0 0
        %1029 = vmatprep.subr.bf16.mxu0 0
        %1030 = vmatpush2.bf16.xpose.msra.mxu0 0
        %1031 = vmatprep.subr.bf16.mxu0 0
        %1032 = vmatpush2.bf16.xpose.msra.mxu0 0
        %1033 = vmatprep.subr.bf16.mxu0 0
        %1034 = vmatpush2.bf16.xpose.msra.mxu0 0
        %1035 = vmatprep.mubr.bf16.mxu0 0
        %1036 = vmatmul.mubr.bf16.gmra.mxu0 %v998
        %v1037 = vpop.f32.mrf.mxu0
        %v1038 = vadd.f32 %v884, %v1037
        %v1039 = vpop.f32.mrf.mxu0
        %v1040 = vpop.f32.mrf.mxu0
        %v1041 = vpop.f32.mrf.mxu0
        %1042 = vdwg.mxu0
        %v1043 = vsel %vm885, %v1038, -inf
        %1044 = vmax.xlane.f32.xlu0 %v1043
        %v1045 = vpop.xlane.xlu0 %1044
        %v1046 = vsub.f32 %v1038, %v1045
        %v1047 = vmul.f32 %v1046, 1.442695
        %v1048 = vpow.pop %v1047
        %v1049 = vsel %vm885, %v1048, 0.0
        %1050 = vadd.xlane.f32.xlu0 %v1049
        %v1051 = vpop.xlane.xlu0 %1050
        %v1052 = vrcp.pop %v1051
        %v1053 = vmul.f32 %v1048, %v1052
        %v1054 = vpack.c.bf16 %v1053, %v1053
        %1056 = vrot.lane.b32.xlu0 %v878, 120
        %v1057 = vpop.permute.xlu0 %1056
        %v1059 = vsel %vm885, %v1054, 0
        %v1062 = vsel %vm947, %v1057, 0
        %1064 = vmatprep.subr.bf16.mxu0 0
        %1065 = vmatpush1.bf16.msra.mxu0 0
        %1066 = vmatprep.subr.bf16.mxu0 0
        %1067 = vmatpush1.bf16.msra.mxu0 0
        %1068 = vmatprep.subr.bf16.mxu0 0
        %1069 = vmatpush1.bf16.msra.mxu0 0
        %1070 = vmatprep.subr.bf16.mxu0 0
        %1071 = vmatpush1.bf16.msra.mxu0 0
        %1072 = vmatprep.subr.bf16.mxu0 0
        %1073 = vmatpush1.bf16.msra.mxu0 0
        %1074 = vmatprep.subr.bf16.mxu0 0
        %1075 = vmatpush1.bf16.msra.mxu0 0
        %1076 = vmatprep.subr.bf16.mxu0 0
        %1077 = vmatpush1.bf16.msra.mxu0 0
        %1078 = vmatprep.subr.bf16.mxu0 0
        %1079 = vmatpush1.bf16.msra.mxu0 %v1062
        %1080 = vmatprep.subr.bf16.mxu0 0
        %1081 = vmatpush2.bf16.msra.mxu0 0
        %1082 = vmatprep.subr.bf16.mxu0 0
        %1083 = vmatpush2.bf16.msra.mxu0 0
        %1084 = vmatprep.subr.bf16.mxu0 0
        %1085 = vmatpush2.bf16.msra.mxu0 0
        %1086 = vmatprep.subr.bf16.mxu0 0
        %1087 = vmatpush2.bf16.msra.mxu0 0
        %1088 = vmatprep.subr.bf16.mxu0 0
        %1089 = vmatpush2.bf16.msra.mxu0 0
        %1090 = vmatprep.subr.bf16.mxu0 0
        %1091 = vmatpush2.bf16.msra.mxu0 0
        %1092 = vmatprep.subr.bf16.mxu0 0
        %1093 = vmatpush2.bf16.msra.mxu0 0
        %1094 = vmatprep.subr.bf16.mxu0 0
        %1095 = vmatpush2.bf16.msra.mxu0 0
        %1096 = vmatprep.mubr.bf16.mxu0 0
        %1097 = vmatmul.mubr.bf16.gmra.mxu0 %v1059
        %v1098 = vpop.f32.mrf.mxu0
        %v1099 = vadd.f32 0.0, %v1098
        %v1100 = vpop.f32.mrf.mxu0
        %v1101 = vpop.f32.mrf.mxu0
        %v1102 = vpop.f32.mrf.mxu0
        %1103 = vdwg.mxu0
        %1104 = vrot.lane.b32.xlu0 %v876, 112
        %v1105 = vpop.permute.xlu0 %1104
        %1106 = vrot.lane.b32.xlu0 %v877, 112
        %v1107 = vpop.permute.xlu0 %1106
        %v1109 = vsel %vm885, %v1105, 0
        %v1112 = vsel %vm885, %v1107, 0
        %1114 = vmatprep.subr.bf16.mxu0 0
        %1115 = vmatpush1.bf16.xpose.msra.mxu0 0
        %1116 = vmatprep.subr.bf16.mxu0 0
        %1117 = vmatpush1.bf16.xpose.msra.mxu0 0
        %1118 = vmatprep.subr.bf16.mxu0 0
        %1119 = vmatpush1.bf16.xpose.msra.mxu0 0
        %1120 = vmatprep.subr.bf16.mxu0 0
        %1121 = vmatpush1.bf16.xpose.msra.mxu0 0
        %1122 = vmatprep.subr.bf16.mxu0 0
        %1123 = vmatpush1.bf16.xpose.msra.mxu0 0
        %1124 = vmatprep.subr.bf16.mxu0 0
        %1125 = vmatpush1.bf16.xpose.msra.mxu0 0
        %1126 = vmatprep.subr.bf16.mxu0 0
        %1127 = vmatpush1.bf16.xpose.msra.mxu0 0
        %1128 = vmatprep.subr.bf16.mxu0 0
        %1129 = vmatpush1.bf16.xpose.msra.mxu0 %v1112
        %1130 = vmatprep.subr.bf16.mxu0 0
        %1131 = vmatpush2.bf16.xpose.msra.mxu0 0
        %1132 = vmatprep.subr.bf16.mxu0 0
        %1133 = vmatpush2.bf16.xpose.msra.mxu0 0
        %1134 = vmatprep.subr.bf16.mxu0 0
        %1135 = vmatpush2.bf16.xpose.msra.mxu0 0
        %1136 = vmatprep.subr.bf16.mxu0 0
        %1137 = vmatpush2.bf16.xpose.msra.mxu0 0
        %1138 = vmatprep.subr.bf16.mxu0 0
        %1139 = vmatpush2.bf16.xpose.msra.mxu0 0
        %1140 = vmatprep.subr.bf16.mxu0 0
        %1141 = vmatpush2.bf16.xpose.msra.mxu0 0
        %1142 = vmatprep.subr.bf16.mxu0 0
        %1143 = vmatpush2.bf16.xpose.msra.mxu0 0
        %1144 = vmatprep.subr.bf16.mxu0 0
        %1145 = vmatpush2.bf16.xpose.msra.mxu0 0
        %1146 = vmatprep.mubr.bf16.mxu0 0
        %1147 = vmatmul.mubr.bf16.gmra.mxu0 %v1109
        %v1148 = vpop.f32.mrf.mxu0
        %v1149 = vadd.f32 %v884, %v1148
        %v1150 = vpop.f32.mrf.mxu0
        %v1151 = vpop.f32.mrf.mxu0
        %v1152 = vpop.f32.mrf.mxu0
        %1153 = vdwg.mxu0
        %v1154 = vsel %vm885, %v1149, -inf
        %1155 = vmax.xlane.f32.xlu0 %v1154
        %v1156 = vpop.xlane.xlu0 %1155
        %v1157 = vsub.f32 %v1149, %v1156
        %v1158 = vmul.f32 %v1157, 1.442695
        %v1159 = vpow.pop %v1158
        %v1160 = vsel %vm885, %v1159, 0.0
        %1161 = vadd.xlane.f32.xlu0 %v1160
        %v1162 = vpop.xlane.xlu0 %1161
        %v1163 = vrcp.pop %v1162
        %v1164 = vmul.f32 %v1159, %v1163
        %v1165 = vpack.c.bf16 %v1164, %v1164
        %1166 = vrot.lane.b32.xlu0 %v878, 112
        %v1167 = vpop.permute.xlu0 %1166
        %v1169 = vsel %vm885, %v1165, 0
        %v1172 = vsel %vm947, %v1167, 0
        %1174 = vmatprep.subr.bf16.mxu0 0
        %1175 = vmatpush1.bf16.msra.mxu0 0
        %1176 = vmatprep.subr.bf16.mxu0 0
        %1177 = vmatpush1.bf16.msra.mxu0 0
        %1178 = vmatprep.subr.bf16.mxu0 0
        %1179 = vmatpush1.bf16.msra.mxu0 0
        %1180 = vmatprep.subr.bf16.mxu0 0
        %1181 = vmatpush1.bf16.msra.mxu0 0
        %1182 = vmatprep.subr.bf16.mxu0 0
        %1183 = vmatpush1.bf16.msra.mxu0 0
        %1184 = vmatprep.subr.bf16.mxu0 0
        %1185 = vmatpush1.bf16.msra.mxu0 0
        %1186 = vmatprep.subr.bf16.mxu0 0
        %1187 = vmatpush1.bf16.msra.mxu0 0
        %1188 = vmatprep.subr.bf16.mxu0 0
        %1189 = vmatpush1.bf16.msra.mxu0 %v1172
        %1190 = vmatprep.subr.bf16.mxu0 0
        %1191 = vmatpush2.bf16.msra.mxu0 0
        %1192 = vmatprep.subr.bf16.mxu0 0
        %1193 = vmatpush2.bf16.msra.mxu0 0
        %1194 = vmatprep.subr.bf16.mxu0 0
        %1195 = vmatpush2.bf16.msra.mxu0 0
        %1196 = vmatprep.subr.bf16.mxu0 0
        %1197 = vmatpush2.bf16.msra.mxu0 0
        %1198 = vmatprep.subr.bf16.mxu0 0
        %1199 = vmatpush2.bf16.msra.mxu0 0
        %1200 = vmatprep.subr.bf16.mxu0 0
        %1201 = vmatpush2.bf16.msra.mxu0 0
        %1202 = vmatprep.subr.bf16.mxu0 0
        %1203 = vmatpush2.bf16.msra.mxu0 0
        %1204 = vmatprep.subr.bf16.mxu0 0
        %1205 = vmatpush2.bf16.msra.mxu0 0
        %1206 = vmatprep.mubr.bf16.mxu0 0
        %1207 = vmatmul.mubr.bf16.gmra.mxu0 %v1169
        %v1208 = vpop.f32.mrf.mxu0
        %v1209 = vadd.f32 0.0, %v1208
        %v1210 = vpop.f32.mrf.mxu0
        %v1211 = vpop.f32.mrf.mxu0
        %v1212 = vpop.f32.mrf.mxu0
        %1213 = vdwg.mxu0
        %1214 = vrot.lane.b32.xlu0 %v876, 104
        %v1215 = vpop.permute.xlu0 %1214
        %1216 = vrot.lane.b32.xlu0 %v877, 104
        %v1217 = vpop.permute.xlu0 %1216
        %v1219 = vsel %vm885, %v1215, 0
        %v1222 = vsel %vm885, %v1217, 0
        %1224 = vmatprep.subr.bf16.mxu0 0
        %1225 = vmatpush1.bf16.xpose.msra.mxu0 0
        %1226 = vmatprep.subr.bf16.mxu0 0
        %1227 = vmatpush1.bf16.xpose.msra.mxu0 0
        %1228 = vmatprep.subr.bf16.mxu0 0
        %1229 = vmatpush1.bf16.xpose.msra.mxu0 0
        %1230 = vmatprep.subr.bf16.mxu0 0
        %1231 = vmatpush1.bf16.xpose.msra.mxu0 0
        %1232 = vmatprep.subr.bf16.mxu0 0
        %1233 = vmatpush1.bf16.xpose.msra.mxu0 0
        %1234 = vmatprep.subr.bf16.mxu0 0
        %1235 = vmatpush1.bf16.xpose.msra.mxu0 0
        %1236 = vmatprep.subr.bf16.mxu0 0
        %1237 = vmatpush1.bf16.xpose.msra.mxu0 0
        %1238 = vmatprep.subr.bf16.mxu0 0
        %1239 = vmatpush1.bf16.xpose.msra.mxu0 %v1222
        %1240 = vmatprep.subr.bf16.mxu0 0
        %1241 = vmatpush2.bf16.xpose.msra.mxu0 0
        %1242 = vmatprep.subr.bf16.mxu0 0
        %1243 = vmatpush2.bf16.xpose.msra.mxu0 0
        %1244 = vmatprep.subr.bf16.mxu0 0
        %1245 = vmatpush2.bf16.xpose.msra.mxu0 0
        %1246 = vmatprep.subr.bf16.mxu0 0
        %1247 = vmatpush2.bf16.xpose.msra.mxu0 0
        %1248 = vmatprep.subr.bf16.mxu0 0
        %1249 = vmatpush2.bf16.xpose.msra.mxu0 0
        %1250 = vmatprep.subr.bf16.mxu0 0
        %1251 = vmatpush2.bf16.xpose.msra.mxu0 0
        %1252 = vmatprep.subr.bf16.mxu0 0
        %1253 = vmatpush2.bf16.xpose.msra.mxu0 0
        %1254 = vmatprep.subr.bf16.mxu0 0
        %1255 = vmatpush2.bf16.xpose.msra.mxu0 0
        %1256 = vmatprep.mubr.bf16.mxu0 0
        %1257 = vmatmul.mubr.bf16.gmra.mxu0 %v1219
        %v1258 = vpop.f32.mrf.mxu0
        %v1259 = vadd.f32 %v884, %v1258
        %v1260 = vpop.f32.mrf.mxu0
        %v1261 = vpop.f32.mrf.mxu0
        %v1262 = vpop.f32.mrf.mxu0
        %1263 = vdwg.mxu0
        %v1264 = vsel %vm885, %v1259, -inf
        %1265 = vmax.xlane.f32.xlu0 %v1264
        %v1266 = vpop.xlane.xlu0 %1265
        %v1267 = vsub.f32 %v1259, %v1266
        %v1268 = vmul.f32 %v1267, 1.442695
        %v1269 = vpow.pop %v1268
        %v1270 = vsel %vm885, %v1269, 0.0
        %1271 = vadd.xlane.f32.xlu0 %v1270
        %v1272 = vpop.xlane.xlu0 %1271
        %v1273 = vrcp.pop %v1272
        %v1274 = vmul.f32 %v1269, %v1273
        %v1275 = vpack.c.bf16 %v1274, %v1274
        %1276 = vrot.lane.b32.xlu0 %v878, 104
        %v1277 = vpop.permute.xlu0 %1276
        %v1279 = vsel %vm885, %v1275, 0
        %v1282 = vsel %vm947, %v1277, 0
        %1284 = vmatprep.subr.bf16.mxu0 0
        %1285 = vmatpush1.bf16.msra.mxu0 0
        %1286 = vmatprep.subr.bf16.mxu0 0
        %1287 = vmatpush1.bf16.msra.mxu0 0
        %1288 = vmatprep.subr.bf16.mxu0 0
        %1289 = vmatpush1.bf16.msra.mxu0 0
        %1290 = vmatprep.subr.bf16.mxu0 0
        %1291 = vmatpush1.bf16.msra.mxu0 0
        %1292 = vmatprep.subr.bf16.mxu0 0
        %1293 = vmatpush1.bf16.msra.mxu0 0
        %1294 = vmatprep.subr.bf16.mxu0 0
        %1295 = vmatpush1.bf16.msra.mxu0 0
        %1296 = vmatprep.subr.bf16.mxu0 0
        %1297 = vmatpush1.bf16.msra.mxu0 0
        %1298 = vmatprep.subr.bf16.mxu0 0
        %1299 = vmatpush1.bf16.msra.mxu0 %v1282
        %1300 = vmatprep.subr.bf16.mxu0 0
        %1301 = vmatpush2.bf16.msra.mxu0 0
        %1302 = vmatprep.subr.bf16.mxu0 0
        %1303 = vmatpush2.bf16.msra.mxu0 0
        %1304 = vmatprep.subr.bf16.mxu0 0
        %1305 = vmatpush2.bf16.msra.mxu0 0
        %1306 = vmatprep.subr.bf16.mxu0 0
        %1307 = vmatpush2.bf16.msra.mxu0 0
        %1308 = vmatprep.subr.bf16.mxu0 0
        %1309 = vmatpush2.bf16.msra.mxu0 0
        %1310 = vmatprep.subr.bf16.mxu0 0
        %1311 = vmatpush2.bf16.msra.mxu0 0
        %1312 = vmatprep.subr.bf16.mxu0 0
        %1313 = vmatpush2.bf16.msra.mxu0 0
        %1314 = vmatprep.subr.bf16.mxu0 0
        %1315 = vmatpush2.bf16.msra.mxu0 0
        %1316 = vmatprep.mubr.bf16.mxu0 0
        %1317 = vmatmul.mubr.bf16.gmra.mxu0 %v1279
        %v1318 = vpop.f32.mrf.mxu0
        %v1319 = vadd.f32 0.0, %v1318
        %v1320 = vpop.f32.mrf.mxu0
        %v1321 = vpop.f32.mrf.mxu0
        %v1322 = vpop.f32.mrf.mxu0
        %1323 = vdwg.mxu0
        %1325 = vrot.lane.b32.xlu0 %v1099, 8
        %v1326 = vpop.permute.xlu0 %1325
        %1329 = vrot.lane.b32.xlu0 %v1209, 16
        %v1330 = vpop.permute.xlu0 %1329
        %1333 = vrot.lane.b32.xlu0 %v1319, 24
        %v1334 = vpop.permute.xlu0 %1333
        %v1336 = vsel %vm885, %v986, %v1326
        %vm1337 = vcmask 130048
        %v1338 = vsel %vm1337, %v1336, %v1330
        %vm1339 = vcmask 195584
        %v1340 = vsel %vm1339, %v1338, %v1334
        %v1341 = vpack.c.bf16 %v1340, %v1340
        %v1342 = vld [vmem:[%s5] sm:$0xf]
        %v1343 = vld [vmem:[%s5 + $0x4] sm:$0xf]
        %v1344 = vld [vmem:[%s5 + $0x8] sm:$0xf]
        %v1345 = vld [vmem:[%s5 + $0xc] sm:$0xf]
        %v1346 = vld [vmem:[%s6] sm:$0x1]
        %v1348 = vlaneseq
        %v1349 = vshrl.u32 %v1348, 7
        %v1350 = vsub.s32 0, %v1349
        %v1351 = vrot.slane %v1346, %v1350
        %v1357 = vunpack.c.l.b16 %v1342
        %v1358 = vunpack.c.l.b16 %v1343
        %v1359 = vunpack.c.l.b16 %v1344
        %v1360 = vunpack.c.l.b16 %v1345
        %v1361 = vpack.c.b16 %v1358, %v1357
        %v1362 = vpack.c.b16 %v1360, %v1359
        %v1366 = vsel %vm720, %v1341, 0
        %1368 = vmatprep.subr.bf16.mxu0 0
        %1369 = vmatpush1.bf16.msra.mxu0 0
        %1370 = vmatprep.subr.bf16.mxu0 0
        %1371 = vmatpush1.bf16.msra.mxu0 0
        %1372 = vmatprep.subr.bf16.mxu0 0
        %1373 = vmatpush1.bf16.msra.mxu0 0
        %1374 = vmatprep.subr.bf16.mxu0 0
        %1375 = vmatpush1.bf16.msra.mxu0 0
        %1376 = vmatprep.subr.bf16.mxu0 0
        %1377 = vmatpush1.bf16.msra.mxu0 0
        %1378 = vmatprep.subr.bf16.mxu0 0
        %1379 = vmatpush1.bf16.msra.mxu0 0
        %1380 = vmatprep.subr.bf16.mxu0 0
        %1381 = vmatpush1.bf16.msra.mxu0 %v1362
        %1382 = vmatprep.subr.bf16.mxu0 0
        %1383 = vmatpush1.bf16.msra.mxu0 %v1361
        %1384 = vmatprep.subr.bf16.mxu0 0
        %1385 = vmatpush2.bf16.msra.mxu0 0
        %1386 = vmatprep.subr.bf16.mxu0 0
        %1387 = vmatpush2.bf16.msra.mxu0 0
        %1388 = vmatprep.subr.bf16.mxu0 0
        %1389 = vmatpush2.bf16.msra.mxu0 0
        %1390 = vmatprep.subr.bf16.mxu0 0
        %1391 = vmatpush2.bf16.msra.mxu0 0
        %1392 = vmatprep.subr.bf16.mxu0 0
        %1393 = vmatpush2.bf16.msra.mxu0 0
        %1394 = vmatprep.subr.bf16.mxu0 0
        %1395 = vmatpush2.bf16.msra.mxu0 0
        %1396 = vmatprep.subr.bf16.mxu0 0
        %1397 = vmatpush2.bf16.msra.mxu0 0
        %1398 = vmatprep.subr.bf16.mxu0 0
        %1399 = vmatpush2.bf16.msra.mxu0 0
        %1400 = vmatprep.mubr.bf16.mxu0 0
        %1401 = vmatmul.mubr.bf16.gmra.mxu0 %v1366
        %v1402 = vpop.f32.mrf.mxu0
        %v1403 = vadd.f32 %v1351, %v1402
        %v1404 = vpop.f32.mrf.mxu0
        %v1405 = vpop.f32.mrf.mxu0
        %v1406 = vpop.f32.mrf.mxu0
        %1407 = vdwg.mxu0
        %v1408 = vadd.f32 %v700, %v1403
        %v1409 = vsel %vm720, %v1408, 0.0
        %1410 = vadd.xlane.f32.xlu0 %v1409
        %v1411 = vpop.xlane.xlu0 %1410
        %v1412 = vrcp.pop 32.0
        %v1413 = vmul.f32 %v1411, %v1412
        %v1414 = vsub.f32 %v1408, %v1413
        %v1415 = vmul.f32 %v1414, %v1414
        %v1416 = vsel %vm720, %v1415, 0.0
        %1417 = vadd.xlane.f32.xlu0 %v1416
        %v1418 = vpop.xlane.xlu0 %1417
        %v1419 = vmul.f32 %v1418, %v1412
        %v1420 = vadd.f32 %v1419, 1e-05
        %v1421 = vrsqrt.pop %v1420
        %v1422 = vmul.f32 %v1414, %v1421
        %v1423 = vld [vmem:[%s7] sm:$0x1]
        %v1425 = vlaneseq
        %v1426 = vshrl.u32 %v1425, 7
        %v1427 = vsub.s32 0, %v1426
        %v1428 = vrot.slane %v1423, %v1427
        %v1430 = vmul.f32 %v1422, %v1428
        %v1431 = vld [vmem:[%s8] sm:$0x1]
        %v1433 = vlaneseq
        %v1434 = vshrl.u32 %v1433, 7
        %v1435 = vsub.s32 0, %v1434
        %v1436 = vrot.slane %v1431, %v1435
        %v1438 = vadd.f32 %v1430, %v1436
        %v1439 = vpack.c.bf16 %v1438, %v1438
        %v1440 = vld [vmem:[%s9] sm:$0xf]
        %v1441 = vld [vmem:[%s9 + $0x4] sm:$0xf]
        %v1442 = vld [vmem:[%s9 + $0x8] sm:$0xf]
        %v1443 = vld [vmem:[%s9 + $0xc] sm:$0xf]
        %v1448 = vunpack.c.l.b16 %v1440
        %v1449 = vunpack.c.l.b16 %v1441
        %v1450 = vunpack.c.l.b16 %v1442
        %v1451 = vunpack.c.l.b16 %v1443
        %v1452 = vpack.c.b16 %v1449, %v1448
        %v1453 = vpack.c.b16 %v1451, %v1450
        %v1457 = vsel %vm720, %v1439, 0
        %1459 = vmatprep.subr.bf16.mxu0 0
        %1460 = vmatpush1.bf16.msra.mxu0 0
        %1461 = vmatprep.subr.bf16.mxu0 0
        %1462 = vmatpush1.bf16.msra.mxu0 0
        %1463 = vmatprep.subr.bf16.mxu0 0
        %1464 = vmatpush1.bf16.msra.mxu0 0
        %1465 = vmatprep.subr.bf16.mxu0 0
        %1466 = vmatpush1.bf16.msra.mxu0 0
        %1467 = vmatprep.subr.bf16.mxu0 0
        %1468 = vmatpush1.bf16.msra.mxu0 0
        %1469 = vmatprep.subr.bf16.mxu0 0
        %1470 = vmatpush1.bf16.msra.mxu0 0
        %1471 = vmatprep.subr.bf16.mxu0 0
        %1472 = vmatpush1.bf16.msra.mxu0 %v1453
        %1473 = vmatprep.subr.bf16.mxu0 0
        %1474 = vmatpush1.bf16.msra.mxu0 %v1452
        %1475 = vmatprep.subr.bf16.mxu0 0
        %1476 = vmatpush2.bf16.msra.mxu0 0
        %1477 = vmatprep.subr.bf16.mxu0 0
        %1478 = vmatpush2.bf16.msra.mxu0 0
        %1479 = vmatprep.subr.bf16.mxu0 0
        %1480 = vmatpush2.bf16.msra.mxu0 0
        %1481 = vmatprep.subr.bf16.mxu0 0
        %1482 = vmatpush2.bf16.msra.mxu0 0
        %1483 = vmatprep.subr.bf16.mxu0 0
        %1484 = vmatpush2.bf16.msra.mxu0 0
        %1485 = vmatprep.subr.bf16.mxu0 0
        %1486 = vmatpush2.bf16.msra.mxu0 0
        %1487 = vmatprep.subr.bf16.mxu0 0
        %1488 = vmatpush2.bf16.msra.mxu0 0
        %1489 = vmatprep.subr.bf16.mxu0 0
        %1490 = vmatpush2.bf16.msra.mxu0 0
        %1491 = vmatprep.mubr.bf16.mxu0 0
        %1492 = vmatmul.mubr.bf16.gmra.mxu0 %v1457
        %v1493 = vpop.f32.mrf.mxu0
        %v1494 = vadd.f32 0.0, %v1493
        %v1495 = vpop.f32.mrf.mxu0
        %v1496 = vpop.f32.mrf.mxu0
        %v1497 = vpop.f32.mrf.mxu0
        %1498 = vdwg.mxu0
        %v1499 = vpack.c.bf16 %v702, %v701
        %v1500 = vld [vmem:[%s10] sm:$0xf]
        %v1501 = vld [vmem:[%s10 + $0x4] sm:$0xf]
        %v1502 = vld [vmem:[%s10 + $0x8] sm:$0xf]
        %v1503 = vld [vmem:[%s10 + $0xc] sm:$0xf]
        %v1508 = vunpack.c.l.b16 %v1500
        %v1509 = vunpack.c.l.b16 %v1501
        %v1510 = vunpack.c.l.b16 %v1502
        %v1511 = vunpack.c.l.b16 %v1503
        %v1512 = vpack.c.b16 %v1509, %v1508
        %v1513 = vpack.c.b16 %v1511, %v1510
        %v1517 = vsel %vm720, %v1499, 0
        %1519 = vmatprep.subr.bf16.mxu0 0
        %1520 = vmatpush1.bf16.msra.mxu0 0
        %1521 = vmatprep.subr.bf16.mxu0 0
        %1522 = vmatpush1.bf16.msra.mxu0 0
        %1523 = vmatprep.subr.bf16.mxu0 0
        %1524 = vmatpush1.bf16.msra.mxu0 0
        %1525 = vmatprep.subr.bf16.mxu0 0
        %1526 = vmatpush1.bf16.msra.mxu0 0
        %1527 = vmatprep.subr.bf16.mxu0 0
        %1528 = vmatpush1.bf16.msra.mxu0 0
        %1529 = vmatprep.subr.bf16.mxu0 0
        %1530 = vmatpush1.bf16.msra.mxu0 0
        %1531 = vmatprep.subr.bf16.mxu0 0
        %1532 = vmatpush1.bf16.msra.mxu0 %v1513
        %1533 = vmatprep.subr.bf16.mxu0 0
        %1534 = vmatpush1.bf16.msra.mxu0 %v1512
        %1535 = vmatprep.subr.bf16.mxu0 0
        %1536 = vmatpush2.bf16.msra.mxu0 0
        %1537 = vmatprep.subr.bf16.mxu0 0
        %1538 = vmatpush2.bf16.msra.mxu0 0
        %1539 = vmatprep.subr.bf16.mxu0 0
        %1540 = vmatpush2.bf16.msra.mxu0 0
        %1541 = vmatprep.subr.bf16.mxu0 0
        %1542 = vmatpush2.bf16.msra.mxu0 0
        %1543 = vmatprep.subr.bf16.mxu0 0
        %1544 = vmatpush2.bf16.msra.mxu0 0
        %1545 = vmatprep.subr.bf16.mxu0 0
        %1546 = vmatpush2.bf16.msra.mxu0 0
        %1547 = vmatprep.subr.bf16.mxu0 0
        %1548 = vmatpush2.bf16.msra.mxu0 0
        %1549 = vmatprep.subr.bf16.mxu0 0
        %1550 = vmatpush2.bf16.msra.mxu0 0
        %1551 = vmatprep.mubr.bf16.mxu0 0
        %1552 = vmatmul.mubr.bf16.gmra.mxu0 %v1517
        %v1553 = vpop.f32.mrf.mxu0
        %v1554 = vadd.f32 0.0, %v1553
        %v1555 = vpop.f32.mrf.mxu0
        %v1556 = vpop.f32.mrf.mxu0
        %v1557 = vadd.f32 0.0, %v1556
        %v1558 = vpop.f32.mrf.mxu0
        %1559 = vdwg.mxu0
        %v1560 = vld [vmem:[%s11] sm:$0xf]
        %v1561 = vld [vmem:[%s11 + $0x4] sm:$0xf]
        %v1562 = vld [vmem:[%s11 + $0x8] sm:$0xf]
        %v1563 = vld [vmem:[%s11 + $0xc] sm:$0xf]
        %v1568 = vunpack.c.l.b16 %v1560
        %v1569 = vunpack.c.l.b16 %v1561
        %v1570 = vunpack.c.l.b16 %v1562
        %v1571 = vunpack.c.l.b16 %v1563
        %v1572 = vpack.c.b16 %v1569, %v1568
        %v1573 = vpack.c.b16 %v1571, %v1570
        %1576 = vmatprep.subr.bf16.mxu0 0
        %1577 = vmatpush1.bf16.msra.mxu0 0
        %1578 = vmatprep.subr.bf16.mxu0 0
        %1579 = vmatpush1.bf16.msra.mxu0 0
        %1580 = vmatprep.subr.bf16.mxu0 0
        %1581 = vmatpush1.bf16.msra.mxu0 0
        %1582 = vmatprep.subr.bf16.mxu0 0
        %1583 = vmatpush1.bf16.msra.mxu0 0
        %1584 = vmatprep.subr.bf16.mxu0 0
        %1585 = vmatpush1.bf16.msra.mxu0 0
        %1586 = vmatprep.subr.bf16.mxu0 0
        %1587 = vmatpush1.bf16.msra.mxu0 0
        %1588 = vmatprep.subr.bf16.mxu0 0
        %1589 = vmatpush1.bf16.msra.mxu0 %v1573
        %1590 = vmatprep.subr.bf16.mxu0 0
        %1591 = vmatpush1.bf16.msra.mxu0 %v1572
        %1592 = vmatprep.subr.bf16.mxu0 0
        %1593 = vmatpush2.bf16.msra.mxu0 0
        %1594 = vmatprep.subr.bf16.mxu0 0
        %1595 = vmatpush2.bf16.msra.mxu0 0
        %1596 = vmatprep.subr.bf16.mxu0 0
        %1597 = vmatpush2.bf16.msra.mxu0 0
        %1598 = vmatprep.subr.bf16.mxu0 0
        %1599 = vmatpush2.bf16.msra.mxu0 0
        %1600 = vmatprep.subr.bf16.mxu0 0
        %1601 = vmatpush2.bf16.msra.mxu0 0
        %1602 = vmatprep.subr.bf16.mxu0 0
        %1603 = vmatpush2.bf16.msra.mxu0 0
        %1604 = vmatprep.subr.bf16.mxu0 0
        %1605 = vmatpush2.bf16.msra.mxu0 0
        %1606 = vmatprep.subr.bf16.mxu0 0
        %1607 = vmatpush2.bf16.msra.mxu0 0
        %1608 = vmatprep.mubr.bf16.mxu0 0
        %1609 = vmatmul.mubr.bf16.gmra.mxu0 %v1517
        %v1610 = vpop.f32.mrf.mxu0
        %v1611 = vadd.f32 0.0, %v1610
        %v1612 = vpop.f32.mrf.mxu0
        %v1613 = vpop.f32.mrf.mxu0
        %v1614 = vadd.f32 0.0, %v1613
        %v1615 = vpop.f32.mrf.mxu0
        %1616 = vdwg.mxu0
        %v1617 = vpack.c.bf16 %v1494, %v1494
        %v1618 = vpack.c.bf16 %v1557, %v1554
        %v1619 = vpack.c.bf16 %v1614, %v1611
        %v1621 = vsel %vm885, %v1617, 0
        %v1624 = vsel %vm885, %v1618, 0
        %1626 = vmatprep.subr.bf16.mxu0 0
        %1627 = vmatpush1.bf16.xpose.msra.mxu0 0
        %1628 = vmatprep.subr.bf16.mxu0 0
        %1629 = vmatpush1.bf16.xpose.msra.mxu0 0
        %1630 = vmatprep.subr.bf16.mxu0 0
        %1631 = vmatpush1.bf16.xpose.msra.mxu0 0
        %1632 = vmatprep.subr.bf16.mxu0 0
        %1633 = vmatpush1.bf16.xpose.msra.mxu0 0
        %1634 = vmatprep.subr.bf16.mxu0 0
        %1635 = vmatpush1.bf16.xpose.msra.mxu0 0
        %1636 = vmatprep.subr.bf16.mxu0 0
        %1637 = vmatpush1.bf16.xpose.msra.mxu0 0
        %1638 = vmatprep.subr.bf16.mxu0 0
        %1639 = vmatpush1.bf16.xpose.msra.mxu0 0
        %1640 = vmatprep.subr.bf16.mxu0 0
        %1641 = vmatpush1.bf16.xpose.msra.mxu0 %v1624
        %1642 = vmatprep.subr.bf16.mxu0 0
        %1643 = vmatpush2.bf16.xpose.msra.mxu0 0
        %1644 = vmatprep.subr.bf16.mxu0 0
        %1645 = vmatpush2.bf16.xpose.msra.mxu0 0
        %1646 = vmatprep.subr.bf16.mxu0 0
        %1647 = vmatpush2.bf16.xpose.msra.mxu0 0
        %1648 = vmatprep.subr.bf16.mxu0 0
        %1649 = vmatpush2.bf16.xpose.msra.mxu0 0
        %1650 = vmatprep.subr.bf16.mxu0 0
        %1651 = vmatpush2.bf16.xpose.msra.mxu0 0
        %1652 = vmatprep.subr.bf16.mxu0 0
        %1653 = vmatpush2.bf16.xpose.msra.mxu0 0
        %1654 = vmatprep.subr.bf16.mxu0 0
        %1655 = vmatpush2.bf16.xpose.msra.mxu0 0
        %1656 = vmatprep.subr.bf16.mxu0 0
        %1657 = vmatpush2.bf16.xpose.msra.mxu0 0
        %1658 = vmatprep.mubr.bf16.mxu0 0
        %1659 = vmatmul.mubr.bf16.gmra.mxu0 %v1621
        %v1660 = vpop.f32.mrf.mxu0
        %v1661 = vadd.f32 0.0, %v1660
        %v1662 = vpop.f32.mrf.mxu0
        %v1663 = vpop.f32.mrf.mxu0
        %v1664 = vpop.f32.mrf.mxu0
        %1665 = vdwg.mxu0
        %v1666 = vsel %vm1337, %v1661, -inf
        %1667 = vmax.xlane.f32.xlu0 %v1666
        %v1668 = vpop.xlane.xlu0 %1667
        %v1669 = vsub.f32 %v1661, %v1668
        %v1670 = vmul.f32 %v1669, 1.442695
        %v1671 = vpow.pop %v1670
        %v1672 = vsel %vm1337, %v1671, 0.0
        %1673 = vadd.xlane.f32.xlu0 %v1672
        %v1674 = vpop.xlane.xlu0 %1673
        %v1675 = vrcp.pop %v1674
        %v1676 = vmul.f32 %v1671, %v1675
        %v1677 = vpack.c.bf16 %v1676, %v1676
        %v1679 = vsel %vm1337, %v1677, 0
        %1681 = vmatprep.subr.bf16.mxu0 0
        %1682 = vmatpush1.bf16.msra.mxu0 0
        %1683 = vmatprep.subr.bf16.mxu0 0
        %1684 = vmatpush1.bf16.msra.mxu0 0
        %1685 = vmatprep.subr.bf16.mxu0 0
        %1686 = vmatpush1.bf16.msra.mxu0 0
        %1687 = vmatprep.subr.bf16.mxu0 0
        %1688 = vmatpush1.bf16.msra.mxu0 0
        %1689 = vmatprep.subr.bf16.mxu0 0
        %1690 = vmatpush1.bf16.msra.mxu0 0
        %1691 = vmatprep.subr.bf16.mxu0 0
        %1692 = vmatpush1.bf16.msra.mxu0 0
        %1693 = vmatprep.subr.bf16.mxu0 0
        %1694 = vmatpush1.bf16.msra.mxu0 0
        %1695 = vmatprep.subr.bf16.mxu0 0
        %1696 = vmatpush1.bf16.msra.mxu0 %v1619
        %1697 = vmatprep.subr.bf16.mxu0 0
        %1698 = vmatpush2.bf16.msra.mxu0 0
        %1699 = vmatprep.subr.bf16.mxu0 0
        %1700 = vmatpush2.bf16.msra.mxu0 0
        %1701 = vmatprep.subr.bf16.mxu0 0
        %1702 = vmatpush2.bf16.msra.mxu0 0
        %1703 = vmatprep.subr.bf16.mxu0 0
        %1704 = vmatpush2.bf16.msra.mxu0 0
        %1705 = vmatprep.subr.bf16.mxu0 0
        %1706 = vmatpush2.bf16.msra.mxu0 0
        %1707 = vmatprep.subr.bf16.mxu0 0
        %1708 = vmatpush2.bf16.msra.mxu0 0
        %1709 = vmatprep.subr.bf16.mxu0 0
        %1710 = vmatpush2.bf16.msra.mxu0 0
        %1711 = vmatprep.subr.bf16.mxu0 0
        %1712 = vmatpush2.bf16.msra.mxu0 0
        %1713 = vmatprep.mubr.bf16.mxu0 0
        %1714 = vmatmul.mubr.bf16.gmra.mxu0 %v1679
        %v1715 = vpop.f32.mrf.mxu0
        %v1716 = vadd.f32 0.0, %v1715
        %v1717 = vpop.f32.mrf.mxu0
        %v1718 = vpop.f32.mrf.mxu0
        %v1719 = vpop.f32.mrf.mxu0
        %1720 = vdwg.mxu0
        %1722 = vrot.lane.b32.xlu0 %v1617, 120
        %v1723 = vpop.permute.xlu0 %1722
        %1725 = vrot.lane.b32.xlu0 %v1618, 120
        %v1726 = vpop.permute.xlu0 %1725
        %v1728 = vsel %vm885, %v1723, 0
        %v1731 = vsel %vm885, %v1726, 0
        %1733 = vmatprep.subr.bf16.mxu0 0
        %1734 = vmatpush1.bf16.xpose.msra.mxu0 0
        %1735 = vmatprep.subr.bf16.mxu0 0
        %1736 = vmatpush1.bf16.xpose.msra.mxu0 0
        %1737 = vmatprep.subr.bf16.mxu0 0
        %1738 = vmatpush1.bf16.xpose.msra.mxu0 0
        %1739 = vmatprep.subr.bf16.mxu0 0
        %1740 = vmatpush1.bf16.xpose.msra.mxu0 0
        %1741 = vmatprep.subr.bf16.mxu0 0
        %1742 = vmatpush1.bf16.xpose.msra.mxu0 0
        %1743 = vmatprep.subr.bf16.mxu0 0
        %1744 = vmatpush1.bf16.xpose.msra.mxu0 0
        %1745 = vmatprep.subr.bf16.mxu0 0
        %1746 = vmatpush1.bf16.xpose.msra.mxu0 0
        %1747 = vmatprep.subr.bf16.mxu0 0
        %1748 = vmatpush1.bf16.xpose.msra.mxu0 %v1731
        %1749 = vmatprep.subr.bf16.mxu0 0
        %1750 = vmatpush2.bf16.xpose.msra.mxu0 0
        %1751 = vmatprep.subr.bf16.mxu0 0
        %1752 = vmatpush2.bf16.xpose.msra.mxu0 0
        %1753 = vmatprep.subr.bf16.mxu0 0
        %1754 = vmatpush2.bf16.xpose.msra.mxu0 0
        %1755 = vmatprep.subr.bf16.mxu0 0
        %1756 = vmatpush2.bf16.xpose.msra.mxu0 0
        %1757 = vmatprep.subr.bf16.mxu0 0
        %1758 = vmatpush2.bf16.xpose.msra.mxu0 0
        %1759 = vmatprep.subr.bf16.mxu0 0
        %1760 = vmatpush2.bf16.xpose.msra.mxu0 0
        %1761 = vmatprep.subr.bf16.mxu0 0
        %1762 = vmatpush2.bf16.xpose.msra.mxu0 0
        %1763 = vmatprep.subr.bf16.mxu0 0
        %1764 = vmatpush2.bf16.xpose.msra.mxu0 0
        %1765 = vmatprep.mubr.bf16.mxu0 0
        %1766 = vmatmul.mubr.bf16.gmra.mxu0 %v1728
        %v1767 = vpop.f32.mrf.mxu0
        %v1768 = vadd.f32 0.0, %v1767
        %v1769 = vpop.f32.mrf.mxu0
        %v1770 = vpop.f32.mrf.mxu0
        %v1771 = vpop.f32.mrf.mxu0
        %1772 = vdwg.mxu0
        %v1773 = vsel %vm1337, %v1768, -inf
        %1774 = vmax.xlane.f32.xlu0 %v1773
        %v1775 = vpop.xlane.xlu0 %1774
        %v1776 = vsub.f32 %v1768, %v1775
        %v1777 = vmul.f32 %v1776, 1.442695
        %v1778 = vpow.pop %v1777
        %v1779 = vsel %vm1337, %v1778, 0.0
        %1780 = vadd.xlane.f32.xlu0 %v1779
        %v1781 = vpop.xlane.xlu0 %1780
        %v1782 = vrcp.pop %v1781
        %v1783 = vmul.f32 %v1778, %v1782
        %v1784 = vpack.c.bf16 %v1783, %v1783
        %1786 = vrot.lane.b32.xlu0 %v1619, 120
        %v1787 = vpop.permute.xlu0 %1786
        %v1790 = vsel %vm1337, %v1784, 0
        %1792 = vmatprep.subr.bf16.mxu0 0
        %1793 = vmatpush1.bf16.msra.mxu0 0
        %1794 = vmatprep.subr.bf16.mxu0 0
        %1795 = vmatpush1.bf16.msra.mxu0 0
        %1796 = vmatprep.subr.bf16.mxu0 0
        %1797 = vmatpush1.bf16.msra.mxu0 0
        %1798 = vmatprep.subr.bf16.mxu0 0
        %1799 = vmatpush1.bf16.msra.mxu0 0
        %1800 = vmatprep.subr.bf16.mxu0 0
        %1801 = vmatpush1.bf16.msra.mxu0 0
        %1802 = vmatprep.subr.bf16.mxu0 0
        %1803 = vmatpush1.bf16.msra.mxu0 0
        %1804 = vmatprep.subr.bf16.mxu0 0
        %1805 = vmatpush1.bf16.msra.mxu0 0
        %1806 = vmatprep.subr.bf16.mxu0 0
        %1807 = vmatpush1.bf16.msra.mxu0 %v1787
        %1808 = vmatprep.subr.bf16.mxu0 0
        %1809 = vmatpush2.bf16.msra.mxu0 0
        %1810 = vmatprep.subr.bf16.mxu0 0
        %1811 = vmatpush2.bf16.msra.mxu0 0
        %1812 = vmatprep.subr.bf16.mxu0 0
        %1813 = vmatpush2.bf16.msra.mxu0 0
        %1814 = vmatprep.subr.bf16.mxu0 0
        %1815 = vmatpush2.bf16.msra.mxu0 0
        %1816 = vmatprep.subr.bf16.mxu0 0
        %1817 = vmatpush2.bf16.msra.mxu0 0
        %1818 = vmatprep.subr.bf16.mxu0 0
        %1819 = vmatpush2.bf16.msra.mxu0 0
        %1820 = vmatprep.subr.bf16.mxu0 0
        %1821 = vmatpush2.bf16.msra.mxu0 0
        %1822 = vmatprep.subr.bf16.mxu0 0
        %1823 = vmatpush2.bf16.msra.mxu0 0
        %1824 = vmatprep.mubr.bf16.mxu0 0
        %1825 = vmatmul.mubr.bf16.gmra.mxu0 %v1790
        %v1826 = vpop.f32.mrf.mxu0
        %v1827 = vadd.f32 0.0, %v1826
        %v1828 = vpop.f32.mrf.mxu0
        %v1829 = vpop.f32.mrf.mxu0
        %v1830 = vpop.f32.mrf.mxu0
        %1831 = vdwg.mxu0
        %1832 = vrot.lane.b32.xlu0 %v1617, 112
        %v1833 = vpop.permute.xlu0 %1832
        %1834 = vrot.lane.b32.xlu0 %v1618, 112
        %v1835 = vpop.permute.xlu0 %1834
        %v1837 = vsel %vm885, %v1833, 0
        %v1840 = vsel %vm885, %v1835, 0
        %1842 = vmatprep.subr.bf16.mxu0 0
        %1843 = vmatpush1.bf16.xpose.msra.mxu0 0
        %1844 = vmatprep.subr.bf16.mxu0 0
        %1845 = vmatpush1.bf16.xpose.msra.mxu0 0
        %1846 = vmatprep.subr.bf16.mxu0 0
        %1847 = vmatpush1.bf16.xpose.msra.mxu0 0
        %1848 = vmatprep.subr.bf16.mxu0 0
        %1849 = vmatpush1.bf16.xpose.msra.mxu0 0
        %1850 = vmatprep.subr.bf16.mxu0 0
        %1851 = vmatpush1.bf16.xpose.msra.mxu0 0
        %1852 = vmatprep.subr.bf16.mxu0 0
        %1853 = vmatpush1.bf16.xpose.msra.mxu0 0
        %1854 = vmatprep.subr.bf16.mxu0 0
        %1855 = vmatpush1.bf16.xpose.msra.mxu0 0
        %1856 = vmatprep.subr.bf16.mxu0 0
        %1857 = vmatpush1.bf16.xpose.msra.mxu0 %v1840
        %1858 = vmatprep.subr.bf16.mxu0 0
        %1859 = vmatpush2.bf16.xpose.msra.mxu0 0
        %1860 = vmatprep.subr.bf16.mxu0 0
        %1861 = vmatpush2.bf16.xpose.msra.mxu0 0
        %1862 = vmatprep.subr.bf16.mxu0 0
        %1863 = vmatpush2.bf16.xpose.msra.mxu0 0
        %1864 = vmatprep.subr.bf16.mxu0 0
        %1865 = vmatpush2.bf16.xpose.msra.mxu0 0
        %1866 = vmatprep.subr.bf16.mxu0 0
        %1867 = vmatpush2.bf16.xpose.msra.mxu0 0
        %1868 = vmatprep.subr.bf16.mxu0 0
        %1869 = vmatpush2.bf16.xpose.msra.mxu0 0
        %1870 = vmatprep.subr.bf16.mxu0 0
        %1871 = vmatpush2.bf16.xpose.msra.mxu0 0
        %1872 = vmatprep.subr.bf16.mxu0 0
        %1873 = vmatpush2.bf16.xpose.msra.mxu0 0
        %1874 = vmatprep.mubr.bf16.mxu0 0
        %1875 = vmatmul.mubr.bf16.gmra.mxu0 %v1837
        %v1876 = vpop.f32.mrf.mxu0
        %v1877 = vadd.f32 0.0, %v1876
        %v1878 = vpop.f32.mrf.mxu0
        %v1879 = vpop.f32.mrf.mxu0
        %v1880 = vpop.f32.mrf.mxu0
        %1881 = vdwg.mxu0
        %v1882 = vsel %vm1337, %v1877, -inf
        %1883 = vmax.xlane.f32.xlu0 %v1882
        %v1884 = vpop.xlane.xlu0 %1883
        %v1885 = vsub.f32 %v1877, %v1884
        %v1886 = vmul.f32 %v1885, 1.442695
        %v1887 = vpow.pop %v1886
        %v1888 = vsel %vm1337, %v1887, 0.0
        %1889 = vadd.xlane.f32.xlu0 %v1888
        %v1890 = vpop.xlane.xlu0 %1889
        %v1891 = vrcp.pop %v1890
        %v1892 = vmul.f32 %v1887, %v1891
        %v1893 = vpack.c.bf16 %v1892, %v1892
        %1894 = vrot.lane.b32.xlu0 %v1619, 112
        %v1895 = vpop.permute.xlu0 %1894
        %v1898 = vsel %vm1337, %v1893, 0
        %1900 = vmatprep.subr.bf16.mxu0 0
        %1901 = vmatpush1.bf16.msra.mxu0 0
        %1902 = vmatprep.subr.bf16.mxu0 0
        %1903 = vmatpush1.bf16.msra.mxu0 0
        %1904 = vmatprep.subr.bf16.mxu0 0
        %1905 = vmatpush1.bf16.msra.mxu0 0
        %1906 = vmatprep.subr.bf16.mxu0 0
        %1907 = vmatpush1.bf16.msra.mxu0 0
        %1908 = vmatprep.subr.bf16.mxu0 0
        %1909 = vmatpush1.bf16.msra.mxu0 0
        %1910 = vmatprep.subr.bf16.mxu0 0
        %1911 = vmatpush1.bf16.msra.mxu0 0
        %1912 = vmatprep.subr.bf16.mxu0 0
        %1913 = vmatpush1.bf16.msra.mxu0 0
        %1914 = vmatprep.subr.bf16.mxu0 0
        %1915 = vmatpush1.bf16.msra.mxu0 %v1895
        %1916 = vmatprep.subr.bf16.mxu0 0
        %1917 = vmatpush2.bf16.msra.mxu0 0
        %1918 = vmatprep.subr.bf16.mxu0 0
        %1919 = vmatpush2.bf16.msra.mxu0 0
        %1920 = vmatprep.subr.bf16.mxu0 0
        %1921 = vmatpush2.bf16.msra.mxu0 0
        %1922 = vmatprep.subr.bf16.mxu0 0
        %1923 = vmatpush2.bf16.msra.mxu0 0
        %1924 = vmatprep.subr.bf16.mxu0 0
        %1925 = vmatpush2.bf16.msra.mxu0 0
        %1926 = vmatprep.subr.bf16.mxu0 0
        %1927 = vmatpush2.bf16.msra.mxu0 0
        %1928 = vmatprep.subr.bf16.mxu0 0
        %1929 = vmatpush2.bf16.msra.mxu0 0
        %1930 = vmatprep.subr.bf16.mxu0 0
        %1931 = vmatpush2.bf16.msra.mxu0 0
        %1932 = vmatprep.mubr.bf16.mxu0 0
        %1933 = vmatmul.mubr.bf16.gmra.mxu0 %v1898
        %v1934 = vpop.f32.mrf.mxu0
        %v1935 = vadd.f32 0.0, %v1934
        %v1936 = vpop.f32.mrf.mxu0
        %v1937 = vpop.f32.mrf.mxu0
        %v1938 = vpop.f32.mrf.mxu0
        %1939 = vdwg.mxu0
        %1940 = vrot.lane.b32.xlu0 %v1617, 104
        %v1941 = vpop.permute.xlu0 %1940
        %1942 = vrot.lane.b32.xlu0 %v1618, 104
        %v1943 = vpop.permute.xlu0 %1942
        %v1945 = vsel %vm885, %v1941, 0
        %v1948 = vsel %vm885, %v1943, 0
        %1950 = vmatprep.subr.bf16.mxu0 0
        %1951 = vmatpush1.bf16.xpose.msra.mxu0 0
        %1952 = vmatprep.subr.bf16.mxu0 0
        %1953 = vmatpush1.bf16.xpose.msra.mxu0 0
        %1954 = vmatprep.subr.bf16.mxu0 0
        %1955 = vmatpush1.bf16.xpose.msra.mxu0 0
        %1956 = vmatprep.subr.bf16.mxu0 0
        %1957 = vmatpush1.bf16.xpose.msra.mxu0 0
        %1958 = vmatprep.subr.bf16.mxu0 0
        %1959 = vmatpush1.bf16.xpose.msra.mxu0 0
        %1960 = vmatprep.subr.bf16.mxu0 0
        %1961 = vmatpush1.bf16.xpose.msra.mxu0 0
        %1962 = vmatprep.subr.bf16.mxu0 0
        %1963 = vmatpush1.bf16.xpose.msra.mxu0 0
        %1964 = vmatprep.subr.bf16.mxu0 0
        %1965 = vmatpush1.bf16.xpose.msra.mxu0 %v1948
        %1966 = vmatprep.subr.bf16.mxu0 0
        %1967 = vmatpush2.bf16.xpose.msra.mxu0 0
        %1968 = vmatprep.subr.bf16.mxu0 0
        %1969 = vmatpush2.bf16.xpose.msra.mxu0 0
        %1970 = vmatprep.subr.bf16.mxu0 0
        %1971 = vmatpush2.bf16.xpose.msra.mxu0 0
        %1972 = vmatprep.subr.bf16.mxu0 0
        %1973 = vmatpush2.bf16.xpose.msra.mxu0 0
        %1974 = vmatprep.subr.bf16.mxu0 0
        %1975 = vmatpush2.bf16.xpose.msra.mxu0 0
        %1976 = vmatprep.subr.bf16.mxu0 0
        %1977 = vmatpush2.bf16.xpose.msra.mxu0 0
        %1978 = vmatprep.subr.bf16.mxu0 0
        %1979 = vmatpush2.bf16.xpose.msra.mxu0 0
        %1980 = vmatprep.subr.bf16.mxu0 0
        %1981 = vmatpush2.bf16.xpose.msra.mxu0 0
        %1982 = vmatprep.mubr.bf16.mxu0 0
        %1983 = vmatmul.mubr.bf16.gmra.mxu0 %v1945
        %v1984 = vpop.f32.mrf.mxu0
        %v1985 = vadd.f32 0.0, %v1984
        %v1986 = vpop.f32.mrf.mxu0
        %v1987 = vpop.f32.mrf.mxu0
        %v1988 = vpop.f32.mrf.mxu0
        %1989 = vdwg.mxu0
        %v1990 = vsel %vm1337, %v1985, -inf
        %1991 = vmax.xlane.f32.xlu0 %v1990
        %v1992 = vpop.xlane.xlu0 %1991
        %v1993 = vsub.f32 %v1985, %v1992
        %v1994 = vmul.f32 %v1993, 1.442695
        %v1995 = vpow.pop %v1994
        %v1996 = vsel %vm1337, %v1995, 0.0
        %1997 = vadd.xlane.f32.xlu0 %v1996
        %v1998 = vpop.xlane.xlu0 %1997
        %v1999 = vrcp.pop %v1998
        %v2000 = vmul.f32 %v1995, %v1999
        %v2001 = vpack.c.bf16 %v2000, %v2000
        %2002 = vrot.lane.b32.xlu0 %v1619, 104
        %v2003 = vpop.permute.xlu0 %2002
        %v2006 = vsel %vm1337, %v2001, 0
        %2008 = vmatprep.subr.bf16.mxu0 0
        %2009 = vmatpush1.bf16.msra.mxu0 0
        %2010 = vmatprep.subr.bf16.mxu0 0
        %2011 = vmatpush1.bf16.msra.mxu0 0
        %2012 = vmatprep.subr.bf16.mxu0 0
        %2013 = vmatpush1.bf16.msra.mxu0 0
        %2014 = vmatprep.subr.bf16.mxu0 0
        %2015 = vmatpush1.bf16.msra.mxu0 0
        %2016 = vmatprep.subr.bf16.mxu0 0
        %2017 = vmatpush1.bf16.msra.mxu0 0
        %2018 = vmatprep.subr.bf16.mxu0 0
        %2019 = vmatpush1.bf16.msra.mxu0 0
        %2020 = vmatprep.subr.bf16.mxu0 0
        %2021 = vmatpush1.bf16.msra.mxu0 0
        %2022 = vmatprep.subr.bf16.mxu0 0
        %2023 = vmatpush1.bf16.msra.mxu0 %v2003
        %2024 = vmatprep.subr.bf16.mxu0 0
        %2025 = vmatpush2.bf16.msra.mxu0 0
        %2026 = vmatprep.subr.bf16.mxu0 0
        %2027 = vmatpush2.bf16.msra.mxu0 0
        %2028 = vmatprep.subr.bf16.mxu0 0
        %2029 = vmatpush2.bf16.msra.mxu0 0
        %2030 = vmatprep.subr.bf16.mxu0 0
        %2031 = vmatpush2.bf16.msra.mxu0 0
        %2032 = vmatprep.subr.bf16.mxu0 0
        %2033 = vmatpush2.bf16.msra.mxu0 0
        %2034 = vmatprep.subr.bf16.mxu0 0
        %2035 = vmatpush2.bf16.msra.mxu0 0
        %2036 = vmatprep.subr.bf16.mxu0 0
        %2037 = vmatpush2.bf16.msra.mxu0 0
        %2038 = vmatprep.subr.bf16.mxu0 0
        %2039 = vmatpush2.bf16.msra.mxu0 0
        %2040 = vmatprep.mubr.bf16.mxu0 0
        %2041 = vmatmul.mubr.bf16.gmra.mxu0 %v2006
        %v2042 = vpop.f32.mrf.mxu0
        %v2043 = vadd.f32 0.0, %v2042
        %v2044 = vpop.f32.mrf.mxu0
        %v2045 = vpop.f32.mrf.mxu0
        %v2046 = vpop.f32.mrf.mxu0
        %2047 = vdwg.mxu0
        %2049 = vrot.lane.b32.xlu0 %v1827, 8
        %v2050 = vpop.permute.xlu0 %2049
        %2053 = vrot.lane.b32.xlu0 %v1935, 16
        %v2054 = vpop.permute.xlu0 %2053
        %2057 = vrot.lane.b32.xlu0 %v2043, 24
        %v2058 = vpop.permute.xlu0 %2057
        %v2060 = vsel %vm885, %v1716, %v2050
        %v2061 = vsel %vm1337, %v2060, %v2054
        %v2062 = vsel %vm1339, %v2061, %v2058
        %v2063 = vpack.c.bf16 %v2062, %v2062
        %v2064 = vld [vmem:[%s12] sm:$0xf]
        %v2065 = vld [vmem:[%s12 + $0x4] sm:$0xf]
        %v2066 = vld [vmem:[%s12 + $0x8] sm:$0xf]
        %v2067 = vld [vmem:[%s12 + $0xc] sm:$0xf]
        %v2068 = vld [vmem:[%s13] sm:$0x1]
        %v2070 = vlaneseq
        %v2071 = vshrl.u32 %v2070, 7
        %v2072 = vsub.s32 0, %v2071
        %v2073 = vrot.slane %v2068, %v2072
        %v2079 = vunpack.c.l.b16 %v2064
        %v2080 = vunpack.c.l.b16 %v2065
        %v2081 = vunpack.c.l.b16 %v2066
        %v2082 = vunpack.c.l.b16 %v2067
        %v2083 = vpack.c.b16 %v2080, %v2079
        %v2084 = vpack.c.b16 %v2082, %v2081
        %v2088 = vsel %vm720, %v2063, 0
        %2090 = vmatprep.subr.bf16.mxu0 0
        %2091 = vmatpush1.bf16.msra.mxu0 0
        %2092 = vmatprep.subr.bf16.mxu0 0
        %2093 = vmatpush1.bf16.msra.mxu0 0
        %2094 = vmatprep.subr.bf16.mxu0 0
        %2095 = vmatpush1.bf16.msra.mxu0 0
        %2096 = vmatprep.subr.bf16.mxu0 0
        %2097 = vmatpush1.bf16.msra.mxu0 0
        %2098 = vmatprep.subr.bf16.mxu0 0
        %2099 = vmatpush1.bf16.msra.mxu0 0
        %2100 = vmatprep.subr.bf16.mxu0 0
        %2101 = vmatpush1.bf16.msra.mxu0 0
        %2102 = vmatprep.subr.bf16.mxu0 0
        %2103 = vmatpush1.bf16.msra.mxu0 %v2084
        %2104 = vmatprep.subr.bf16.mxu0 0
        %2105 = vmatpush1.bf16.msra.mxu0 %v2083
        %2106 = vmatprep.subr.bf16.mxu0 0
        %2107 = vmatpush2.bf16.msra.mxu0 0
        %2108 = vmatprep.subr.bf16.mxu0 0
        %2109 = vmatpush2.bf16.msra.mxu0 0
        %2110 = vmatprep.subr.bf16.mxu0 0
        %2111 = vmatpush2.bf16.msra.mxu0 0
        %2112 = vmatprep.subr.bf16.mxu0 0
        %2113 = vmatpush2.bf16.msra.mxu0 0
        %2114 = vmatprep.subr.bf16.mxu0 0
        %2115 = vmatpush2.bf16.msra.mxu0 0
        %2116 = vmatprep.subr.bf16.mxu0 0
        %2117 = vmatpush2.bf16.msra.mxu0 0
        %2118 = vmatprep.subr.bf16.mxu0 0
        %2119 = vmatpush2.bf16.msra.mxu0 0
        %2120 = vmatprep.subr.bf16.mxu0 0
        %2121 = vmatpush2.bf16.msra.mxu0 0
        %2122 = vmatprep.mubr.bf16.mxu0 0
        %2123 = vmatmul.mubr.bf16.gmra.mxu0 %v2088
        %v2124 = vpop.f32.mrf.mxu0
        %v2125 = vadd.f32 %v2073, %v2124
        %v2126 = vpop.f32.mrf.mxu0
        %v2127 = vpop.f32.mrf.mxu0
        %v2128 = vpop.f32.mrf.mxu0
        %2129 = vdwg.mxu0
        %v2130 = vadd.f32 %v1438, %v2125
        %v2131 = vsel %vm720, %v2130, 0.0
        %2132 = vadd.xlane.f32.xlu0 %v2131
        %v2133 = vpop.xlane.xlu0 %2132
        %v2134 = vmul.f32 %v2133, %v1412
        %v2135 = vsub.f32 %v2130, %v2134
        %v2136 = vmul.f32 %v2135, %v2135
        %v2137 = vsel %vm720, %v2136, 0.0
        %2138 = vadd.xlane.f32.xlu0 %v2137
        %v2139 = vpop.xlane.xlu0 %2138
        %v2140 = vmul.f32 %v2139, %v1412
        %v2141 = vadd.f32 %v2140, 1e-05
        %v2142 = vrsqrt.pop %v2141
        %v2143 = vmul.f32 %v2135, %v2142
        %v2144 = vld [vmem:[%s14] sm:$0x1]
        %v2146 = vlaneseq
        %v2147 = vshrl.u32 %v2146, 7
        %v2148 = vsub.s32 0, %v2147
        %v2149 = vrot.slane %v2144, %v2148
        %v2151 = vmul.f32 %v2143, %v2149
        %v2152 = vld [vmem:[%s15] sm:$0x1]
        %v2154 = vlaneseq
        %v2155 = vshrl.u32 %v2154, 7
        %v2156 = vsub.s32 0, %v2155
        %v2157 = vrot.slane %v2152, %v2156
        %v2159 = vadd.f32 %v2151, %v2157
        %v2160 = vpack.c.bf16 %v2159, %v2159
        %v2161 = vld [vmem:[%s16] sm:$0xf]
        %v2162 = vld [vmem:[%s16 + $0x4] sm:$0xf]
        %v2163 = vld [vmem:[%s16 + $0x8] sm:$0xf]
        %v2164 = vld [vmem:[%s16 + $0xc] sm:$0xf]
        %v2165 = vld [vmem:[%s17] sm:$0x1]
        %v2167 = vlaneseq
        %v2168 = vshrl.u32 %v2167, 7
        %v2169 = vsub.s32 0, %v2168
        %v2170 = vrot.slane %v2165, %v2169
        %v2176 = vunpack.c.l.b16 %v2161
        %v2177 = vunpack.c.l.b16 %v2162
        %v2178 = vunpack.c.l.b16 %v2163
        %v2179 = vunpack.c.l.b16 %v2164
        %v2180 = vpack.c.b16 %v2177, %v2176
        %v2181 = vpack.c.b16 %v2179, %v2178
        %v2185 = vsel %vm720, %v2160, 0
        %2187 = vmatprep.subr.bf16.mxu0 0
        %2188 = vmatpush1.bf16.msra.mxu0 0
        %2189 = vmatprep.subr.bf16.mxu0 0
        %2190 = vmatpush1.bf16.msra.mxu0 0
        %2191 = vmatprep.subr.bf16.mxu0 0
        %2192 = vmatpush1.bf16.msra.mxu0 0
        %2193 = vmatprep.subr.bf16.mxu0 0
        %2194 = vmatpush1.bf16.msra.mxu0 0
        %2195 = vmatprep.subr.bf16.mxu0 0
        %2196 = vmatpush1.bf16.msra.mxu0 0
        %2197 = vmatprep.subr.bf16.mxu0 0
        %2198 = vmatpush1.bf16.msra.mxu0 0
        %2199 = vmatprep.subr.bf16.mxu0 0
        %2200 = vmatpush1.bf16.msra.mxu0 %v2181
        %2201 = vmatprep.subr.bf16.mxu0 0
        %2202 = vmatpush1.bf16.msra.mxu0 %v2180
        %2203 = vmatprep.subr.bf16.mxu0 0
        %2204 = vmatpush2.bf16.msra.mxu0 0
        %2205 = vmatprep.subr.bf16.mxu0 0
        %2206 = vmatpush2.bf16.msra.mxu0 0
        %2207 = vmatprep.subr.bf16.mxu0 0
        %2208 = vmatpush2.bf16.msra.mxu0 0
        %2209 = vmatprep.subr.bf16.mxu0 0
        %2210 = vmatpush2.bf16.msra.mxu0 0
        %2211 = vmatprep.subr.bf16.mxu0 0
        %2212 = vmatpush2.bf16.msra.mxu0 0
        %2213 = vmatprep.subr.bf16.mxu0 0
        %2214 = vmatpush2.bf16.msra.mxu0 0
        %2215 = vmatprep.subr.bf16.mxu0 0
        %2216 = vmatpush2.bf16.msra.mxu0 0
        %2217 = vmatprep.subr.bf16.mxu0 0
        %2218 = vmatpush2.bf16.msra.mxu0 0
        %2219 = vmatprep.mubr.bf16.mxu0 0
        %2220 = vmatmul.mubr.bf16.gmra.mxu0 %v2185
        %v2221 = vpop.f32.mrf.mxu0
        %v2222 = vadd.f32 %v2170, %v2221
        %v2223 = vpop.f32.mrf.mxu0
        %v2224 = vpop.f32.mrf.mxu0
        %v2225 = vpop.f32.mrf.mxu0
        %2226 = vdwg.mxu0
        %v2227 = vmax.f32 %v2222, 0.0
        %v2228 = vpack.c.bf16 %v2227, %v2227
        %v2229 = vld [vmem:[%s18] sm:$0xf]
        %v2230 = vld [vmem:[%s18 + $0x4] sm:$0xf]
        %v2231 = vld [vmem:[%s18 + $0x8] sm:$0xf]
        %v2232 = vld [vmem:[%s18 + $0xc] sm:$0xf]
        %v2233 = vld [vmem:[%s18 + $0x10] sm:$0xf]
        %v2234 = vld [vmem:[%s18 + $0x14] sm:$0xf]
        %v2235 = vld [vmem:[%s18 + $0x18] sm:$0xf]
        %v2236 = vld [vmem:[%s18 + $0x1c] sm:$0xf]
        %v2237 = vld [vmem:[%s19] sm:$0x1]
        %v2239 = vlaneseq
        %v2240 = vshrl.u32 %v2239, 7
        %v2241 = vsub.s32 0, %v2240
        %v2242 = vrot.slane %v2237, %v2241
        %v2252 = vunpack.c.l.b16 %v2229
        %v2253 = vunpack.c.l.b16 %v2230
        %v2254 = vunpack.c.l.b16 %v2231
        %v2255 = vunpack.c.l.b16 %v2232
        %v2256 = vunpack.c.l.b16 %v2233
        %v2257 = vunpack.c.l.b16 %v2234
        %v2258 = vunpack.c.l.b16 %v2235
        %v2259 = vunpack.c.l.b16 %v2236
        %v2260 = vpack.c.b16 %v2253, %v2252
        %v2261 = vpack.c.b16 %v2255, %v2254
        %v2262 = vpack.c.b16 %v2257, %v2256
        %v2263 = vpack.c.b16 %v2259, %v2258
        %vm2268 = vcmask 523264
        %v2270 = vsel %vm2268, %v2228, 0
        %2272 = vmatprep.subr.bf16.mxu0 0
        %2273 = vmatpush1.bf16.msra.mxu0 0
        %2274 = vmatprep.subr.bf16.mxu0 0
        %2275 = vmatpush1.bf16.msra.mxu0 0
        %2276 = vmatprep.subr.bf16.mxu0 0
        %2277 = vmatpush1.bf16.msra.mxu0 0
        %2278 = vmatprep.subr.bf16.mxu0 0
        %2279 = vmatpush1.bf16.msra.mxu0 0
        %2280 = vmatprep.subr.bf16.mxu0 0
        %2281 = vmatpush1.bf16.msra.mxu0 %v2263
        %2282 = vmatprep.subr.bf16.mxu0 0
        %2283 = vmatpush1.bf16.msra.mxu0 %v2262
        %2284 = vmatprep.subr.bf16.mxu0 0
        %2285 = vmatpush1.bf16.msra.mxu0 %v2261
        %2286 = vmatprep.subr.bf16.mxu0 0
        %2287 = vmatpush1.bf16.msra.mxu0 %v2260
        %2288 = vmatprep.subr.bf16.mxu0 0
        %2289 = vmatpush2.bf16.msra.mxu0 0
        %2290 = vmatprep.subr.bf16.mxu0 0
        %2291 = vmatpush2.bf16.msra.mxu0 0
        %2292 = vmatprep.subr.bf16.mxu0 0
        %2293 = vmatpush2.bf16.msra.mxu0 0
        %2294 = vmatprep.subr.bf16.mxu0 0
        %2295 = vmatpush2.bf16.msra.mxu0 0
        %2296 = vmatprep.subr.bf16.mxu0 0
        %2297 = vmatpush2.bf16.msra.mxu0 0
        %2298 = vmatprep.subr.bf16.mxu0 0
        %2299 = vmatpush2.bf16.msra.mxu0 0
        %2300 = vmatprep.subr.bf16.mxu0 0
        %2301 = vmatpush2.bf16.msra.mxu0 0
        %2302 = vmatprep.subr.bf16.mxu0 0
        %2303 = vmatpush2.bf16.msra.mxu0 0
        %2304 = vmatprep.mubr.bf16.mxu0 0
        %2305 = vmatmul.mubr.bf16.gmra.mxu0 %v2270
        %v2306 = vpop.f32.mrf.mxu0
        %v2307 = vadd.f32 %v2242, %v2306
        %v2308 = vpop.f32.mrf.mxu0
        %v2309 = vpop.f32.mrf.mxu0
        %v2310 = vpop.f32.mrf.mxu0
        %2311 = vdwg.mxu0
        %v2312 = vadd.f32 %v2159, %v2307
        %v2313 = vsel %vm720, %v2312, 0.0
        %2314 = vadd.xlane.f32.xlu0 %v2313
        %v2315 = vpop.xlane.xlu0 %2314
        %v2316 = vmul.f32 %v2315, %v1412
        %v2317 = vsub.f32 %v2312, %v2316
        %v2318 = vmul.f32 %v2317, %v2317
        %v2319 = vsel %vm720, %v2318, 0.0
        %2320 = vadd.xlane.f32.xlu0 %v2319
        %v2321 = vpop.xlane.xlu0 %2320
        %v2322 = vmul.f32 %v2321, %v1412
        %v2323 = vadd.f32 %v2322, 1e-05
        %v2324 = vrsqrt.pop %v2323
        %v2325 = vmul.f32 %v2317, %v2324
        %v2326 = vld [vmem:[%s20] sm:$0x1]
        %v2328 = vlaneseq
        %v2329 = vshrl.u32 %v2328, 7
        %v2330 = vsub.s32 0, %v2329
        %v2331 = vrot.slane %v2326, %v2330
        %v2333 = vmul.f32 %v2325, %v2331
        %v2334 = vld [vmem:[%s21] sm:$0x1]
        %v2336 = vlaneseq
        %v2337 = vshrl.u32 %v2336, 7
        %v2338 = vsub.s32 0, %v2337
        %v2339 = vrot.slane %v2334, %v2338
        %v2341 = vadd.f32 %v2333, %v2339
        %2342 = vst.msk [vmem:[%s689] sm:$0xff] %vm720, %v2341
        %s2343 = sand.u32 %s516, 1
        %s2344 = scalar_lea.sflag [#allocation3], %s2343
        %s2345 = sand.u32 %s516, 1
        %s2346 = smul.addr %s2345, 8
        %s2347 = scalar_lea.vmem [#allocation2], %s2346
        // Predicated region
        $region109: #{decoder_layer_forward.1} parent=107 // pred_check
          %p2348 = pneg %p526
        $region110: #{decoder_layer_forward.1} parent=107 // pred_check_branch
          %2350 = sbr.rel (%p2348) target = $region112
        $region111: #{decoder_layer_forward.1} parent=107 // pred_region
          %s2352 = ssub.s32 128, 128
          %2353 = vsyncadd %s2344, %s2352
          %s2354 = smul.addr %s36, 128
          %s2355 = scalar_lea.hbm %s22, %s2354
          %s2357 = sshll.u32 %s2347, 4
          %s2358 = int_to_ptr.vmem [resolvable:$true] %s2357
          %2360 = dma.vmem_to_hbm [thread:$0]  %s2358, 128, %s2355, %s2344
        $region112: #{decoder_layer_forward.1} parent=107 // pred_fallthru
          _
      $region108: #{decoder_layer_forward.1} parent=5 // pred_fallthru
        _
      %p2361 = scmp.le.s32.totalorder 2, %s31
      // Predicated region
      $region113: #{decoder_layer_forward.1} parent=5 // pred_check
        %p2362 = pneg %p2361
      $region114: #{decoder_layer_forward.1} parent=5 // pred_check_branch
        %2364 = sbr.rel (%p2362) target = $region116
      $region115: #{decoder_layer_forward.1} parent=5 // pred_region
        %s2365 = ssub.s32 %s31, 2
        // Predicated region
        $region117: #{decoder_layer_forward.1} parent=115 // pred_check
          %p2366 = pneg %p532
        $region118: #{decoder_layer_forward.1} parent=115 // pred_check_branch
          %2368 = sbr.rel (%p2366) target = $region120
        $region119: #{decoder_layer_forward.1} parent=115 // pred_region
          %s2369 = sand.u32 %s517, 1
          %s2370 = scalar_lea.sflag [#allocation3], %s2369
          %s2371 = sand.u32 %s517, 1
          %s2372 = smul.addr %s2371, 8
          %s2373 = scalar_lea.vmem [#allocation2], %s2372
          %2374 = dma.done %s2370, 128
        $region120: #{decoder_layer_forward.1} parent=115 // pred_fallthru
          _
      $region116: #{decoder_layer_forward.1} parent=5 // pred_fallthru
        _
    $region6: #{decoder_layer_forward.1} parent=1 // loop_footer
      %s35 = sadd.s32 1, %s31
    $region7: #{decoder_layer_forward.1} parent=1 // loop_footer_branch
      %30 = sbr.rel target = $region3
    $region8: #{decoder_layer_forward.1} parent=1 // loop_exit
      _
    %2375 = vsyncpa [#allocation3], 1
    %s2376 = scalar_lea.sflag [#allocation3], 1
    %2377 = vsyncpa %s2376, 1

</llo_original>
